<compile_context>
chip_gen: v5e
topology: v5e:2x2
jax: 0.10.0
libtpu: 0.0.40
codegen_flags: <defaults>
</compile_context>

<pallas_src>
import jax
import jax.numpy as jnp
from jax import lax
from jax.experimental import pallas as pl
from jax.experimental.pallas import tpu as pltpu

MP_CHANNELS = 32        # message_passing_channels
NUM_CLASSES = 2         # PROTEINS has 2 classes
IN_FEATURES = 4         # PROTEINS node features (use_node_attr=True)
K1 = 8                  # clusters after pool1
K2 = 4                  # clusters after pool2

OUT_W = 8               # packed per-graph output lanes: [logits(NC) | tv | bal | pad]
PARAM_ROWS = MP_CHANNELS + 8
PARAM_LANES = 128

# packed-parameter slab layout (rows 0..C-1 hold weights by column group,
# rows C.. hold one bias per row)
_W2_OFF = 0
_W3_OFF = MP_CHANNELS
_WS1_OFF = 2 * MP_CHANNELS
_WS2_OFF = _WS1_OFF + K1
_WOUT_OFF = _WS2_OFF + K2
_B1_ROW = MP_CHANNELS
_B2_ROW = MP_CHANNELS + 1
_B3_ROW = MP_CHANNELS + 2
_BS1_ROW = MP_CHANNELS + 3
_BS2_ROW = MP_CHANNELS + 4
_BOUT_ROW = MP_CHANNELS + 5


# --------------------------- in-kernel helpers ---------------------------

def _gcn(a, h, b):
    """relu((A + I) @ H + b) written as relu(A@H + H + b) — no identity matrix.

    bf16 MXU matmul with f32 accumulation; bias/residual added in f32.
    """
    z = jnp.dot(a.astype(jnp.bfloat16), h.astype(jnp.bfloat16),
                preferred_element_type=jnp.float32)
    z = z + h.astype(jnp.float32) + b
    return jnp.maximum(z, 0.0)


def _pool(x, a, ws, bs, m=None):
    """TV-style dense pooling for one graph.

    x: (N, C) f32 node features, a: (N, N) adjacency (bf16 at level 1, f32 pooled),
    ws: (C, K) / bs: (1, K) selection params, m: optional (N, 1) node mask.
    Returns pooled features (K, C) f32, pooled adjacency (K, K) f32, tv (1,1), bal (1,1).
    """
    k = ws.shape[1]

    # cluster assignment: softmax over clusters (f32), then zero padded nodes
    logits = jnp.dot(x.astype(jnp.bfloat16), ws.astype(jnp.bfloat16),
                     preferred_element_type=jnp.float32) + bs
    logits = logits - jnp.max(logits, axis=-1, keepdims=True)
    e = jnp.exp(logits)
    s = e * pl.reciprocal(jnp.sum(e, axis=-1, keepdims=True), approx=True)   # (N, K)
    if m is not None:
        s = s * m

    s_t = jnp.transpose(s)                      # (K, N) — one XLU transpose, reused
    sb = s.astype(jnp.bfloat16)
    s_tb = s_t.astype(jnp.bfloat16)

    xp = jnp.dot(s_tb, x.astype(jnp.bfloat16), preferred_element_type=jnp.float32)   # (K, C)
    sta = jnp.dot(s_tb, a.astype(jnp.bfloat16), preferred_element_type=jnp.float32)  # (K, N)
    ap = jnp.dot(sta.astype(jnp.bfloat16), sb, preferred_element_type=jnp.float32)   # (K, K)

    # total variation: sum_ij A_ij * ||s_i - s_j||_1 / (2 * sum_ij A_ij)
    # single (N, N) L1-distance accumulator, then ONE multiply-reduce against A.
    dacc = jnp.abs(s[:, 0:1] - s_t[0:1, :])
    for kk in range(1, k):                      # static unroll, k <= 8
        dacc = dacc + jnp.abs(s[:, kk:kk + 1] - s_t[kk:kk + 1, :])
    a32 = a.astype(jnp.float32)                 # one bf16->f32 cast, used twice
    deg = jnp.sum(a32, keepdims=True)           # (1, 1)
    tv = (jnp.sum(a32 * dacc, keepdims=True)
          * pl.reciprocal(2.0 * deg + 1e-9, approx=True))

    # balance / orthogonality loss
    # TODO(synk): MinCut-style orthogonality stand-in for the asymmetric TV balance term.
    ss = jnp.dot(s_tb, sb, preferred_element_type=jnp.float32)                       # (K, K)
    rk = lax.broadcasted_iota(jnp.int32, (k, k), 0)
    ck = lax.broadcasted_iota(jnp.int32, (k, k), 1)
    eye_k = (rk == ck).astype(jnp.float32)
    frob = jnp.sqrt(jnp.sum(ss * ss, keepdims=True) + 1e-12)
    diff = ss * pl.reciprocal(frob, approx=True) - eye_k * (1.0 / (k ** 0.5))
    bal = jnp.sqrt(jnp.sum(diff * diff, keepdims=True) + 1e-12)
    return xp, ap, tv, bal


# --------------------------- fused forward kernel ---------------------------

def _make_fused_kernel(graphs_per_step):
    G = graphs_per_step
    C = MP_CHANNELS
    NC = NUM_CLASSES

    def kernel(counts_ref, h1_ref, adj_ref, p_ref, out_ref):
        # unpack the packed parameter slab once per step (static slices)
        w2 = p_ref[0:C, _W2_OFF:_W2_OFF + C]
        w3 = p_ref[0:C, _W3_OFF:_W3_OFF + C]
        ws1 = p_ref[0:C, _WS1_OFF:_WS1_OFF + K1]
        ws2 = p_ref[0:C, _WS2_OFF:_WS2_OFF + K2]
        wout = p_ref[0:C, _WOUT_OFF:_WOUT_OFF + NC]
        b1 = p_ref[_B1_ROW:_B1_ROW + 1, 0:C]
        b2 = p_ref[_B2_ROW:_B2_ROW + 1, 0:C]
        b3 = p_ref[_B3_ROW:_B3_ROW + 1, 0:C]
        bs1 = p_ref[_BS1_ROW:_BS1_ROW + 1, 0:K1]
        bs2 = p_ref[_BS2_ROW:_BS2_ROW + 1, 0:K2]
        bout = p_ref[_BOUT_ROW:_BOUT_ROW + 1, 0:NC]

        n = h1_ref.shape[1]
        row = lax.broadcasted_iota(jnp.int32, (n, 1), 0)
        base = pl.program_id(0) * G

        out_ref[...] = jnp.zeros(out_ref.shape, jnp.float32)

        # G is capped small (<= 8), so a static unroll keeps all indexing static
        # and the per-iteration live set bounded.
        for g in range(G):
            cnt = counts_ref[base + g]
            m = (row < cnt).astype(jnp.float32)      # mask rebuilt in-kernel (no HBM stream)
            a0 = adj_ref[g]                          # (N, N) bf16 — stays bf16 for the MXU
            h1 = h1_ref[g]                           # (N, C) bf16 = X @ W1 (hoisted)

            # mp1 (masked, matching to_dense_batch semantics)
            x1 = _gcn(a0, h1, b1) * m
            # pool1 (masked)
            x1p, a1, tv1, bal1 = _pool(x1, a0, ws1, bs1, m)
            # mp2 on the pooled graph
            h2 = jnp.dot(x1p.astype(jnp.bfloat16), w2.astype(jnp.bfloat16),
                         preferred_element_type=jnp.float32)
            x2 = _gcn(a1, h2, b2)
            # pool2 (called without mask in the reference)
            x2p, a2, tv2, bal2 = _pool(x2, a1, ws2, bs2, None)
            # mp3
            h3 = jnp.dot(x2p.astype(jnp.bfloat16), w3.astype(jnp.bfloat16),
                         preferred_element_type=jnp.float32)
            x3 = _gcn(a2, h3, b3)
            # readout: x.mean(dim=1) then Linear
            xm = jnp.mean(x3, axis=0, keepdims=True)                              # (1, C)
            logit = jnp.dot(xm, wout, preferred_element_type=jnp.float32) + bout  # (1, NC)

            out_ref[g, 0:1, 0:NC] = logit
            out_ref[g, 0:1, NC:NC + 1] = tv1 + tv2
            out_ref[g, 0:1, NC + 1:NC + 2] = bal1 + bal2

    return kernel


def fused_forward(h1d, adj, counts, pslab, graphs_per_step, vmem_limit_bytes):
    b_pad, n_pad, c = h1d.shape
    G = graphs_per_step
    assert b_pad % G == 0
    grid_len = b_pad // G

    packed = pl.pallas_call(
        _make_fused_kernel(G),
        out_shape=jax.ShapeDtypeStruct((b_pad, 1, OUT_W), jnp.float32),
        grid_spec=pltpu.PrefetchScalarGridSpec(
            num_scalar_prefetch=1,                                   # per-graph node counts -> SMEM
            grid=(grid_len,),
            in_specs=[
                pl.BlockSpec((G, n_pad, c), lambda i, cnts: (i, 0, 0)),        # H1 (bf16)
                pl.BlockSpec((G, n_pad, n_pad), lambda i, cnts: (i, 0, 0)),    # adjacency (bf16)
                pl.BlockSpec((PARAM_ROWS, PARAM_LANES), lambda i, cnts: (0, 0)),  # packed params
            ],
            out_specs=pl.BlockSpec((G, 1, OUT_W), lambda i, cnts: (i, 0, 0)),
        ),
        compiler_params=pltpu.CompilerParams(
            dimension_semantics=("parallel",),       # per-graph outputs only -> race-free
            vmem_limit_bytes=vmem_limit_bytes,
        ),
    )(counts, h1d, adj, pslab)
    return packed


# --------------------------- plain-JAX glue ---------------------------

def _round_up(x, m):
    return ((x + m - 1) // m) * m


def _vmem_capacity_bytes():
    try:
        return int(pltpu.get_tpu_info().vmem_capacity_bytes)
    except Exception:
        return 64 * 1024 * 1024          # v7x-safe fallback


def _choose_blocking(num_graphs, n_pad, channels):
    """Pick graphs-per-step G and a vmem limit from the chip's VMEM capacity."""
    cap = _vmem_capacity_bytes()
    per_graph = n_pad * n_pad * 2 + n_pad * channels * 2          # bf16 bytes / graph / step
    g = min(8, max(1, (cap // 8) // max(per_graph, 1)), max(1, num_graphs))
    if num_graphs >= 2:
        g = min(g, max(1, num_graphs // 2))   # grid >= 2 -> both v7x TensorCores get work
    g = max(1, g)
    need = 2 * g * per_graph + 6 * n_pad * n_pad * 4 + (4 << 20)  # blocks + intermediates + slack
    vmem_limit = int(min(cap - (4 << 20), max(need, 32 << 20)))
    return g, vmem_limit


def node_counts_and_positions(batch, num_graphs):
    counts = jax.ops.segment_sum(jnp.ones_like(batch), batch, num_segments=num_graphs)
    starts = jnp.concatenate([jnp.zeros((1,), counts.dtype), jnp.cumsum(counts)[:-1]])
    pos = jnp.arange(batch.shape[0], dtype=batch.dtype) - starts[batch]
    return counts, pos


def pack_params(params):
    """Pack all in-kernel weights/biases into one (C+8, 128) f32, lane-padded slab."""
    c = MP_CHANNELS
    slab = jnp.zeros((PARAM_ROWS, PARAM_LANES), jnp.float32)
    slab = slab.at[0:c, _W2_OFF:_W2_OFF + c].set(params["w2"])
    slab = slab.at[0:c, _W3_OFF:_W3_OFF + c].set(params["w3"])
    slab = slab.at[0:c, _WS1_OFF:_WS1_OFF + K1].set(params["ws1"])
    slab = slab.at[0:c, _WS2_OFF:_WS2_OFF + K2].set(params["ws2"])
    slab = slab.at[0:c, _WOUT_OFF:_WOUT_OFF + NUM_CLASSES].set(params["wout"])
    slab = slab.at[_B1_ROW, 0:c].set(params["b1"][0])
    slab = slab.at[_B2_ROW, 0:c].set(params["b2"][0])
    slab = slab.at[_B3_ROW, 0:c].set(params["b3"][0])
    slab = slab.at[_BS1_ROW, 0:K1].set(params["bs1"][0])
    slab = slab.at[_BS2_ROW, 0:K2].set(params["bs2"][0])
    slab = slab.at[_BOUT_ROW, 0:NUM_CLASSES].set(params["bout"][0])
    return slab


def classification_forward(params, x, edge_index, edge_weight, batch, num_graphs, n_max):
    counts, pos = node_counts_and_positions(batch, num_graphs)

    # mp1's shared-weight matmul hoisted out of the per-graph grid:
    # one (total_nodes, Cin) @ (Cin, C) MXU op feeding every graph, shipped as bf16.
    h1_flat = jnp.dot(x, params["w1"]).astype(jnp.bfloat16)

    n_pad = _round_up(max(n_max, 8), 128)            # lane-dense tiles (N multiple of 128)
    g, vmem_limit = _choose_blocking(num_graphs, n_pad, MP_CHANNELS)
    b_pad = _round_up(num_graphs, g)

    # dense batched tensors (zero-padded in both node and batch dims)
    h1d = jnp.zeros((b_pad, n_pad, MP_CHANNELS), jnp.bfloat16).at[batch, pos].set(h1_flat)
    src, dst = edge_index[0], edge_index[1]
    adj = jnp.zeros((b_pad, n_pad, n_pad), jnp.float32)
    adj = adj.at[batch[src], pos[src], pos[dst]].add(edge_weight).astype(jnp.bfloat16)
    counts_pad = jnp.zeros((b_pad,), jnp.int32).at[:num_graphs].set(counts.astype(jnp.int32))

    pslab = pack_params(params)
    packed = fused_forward(h1d, adj, counts_pad, pslab, g, vmem_limit)

    logits = packed[:num_graphs, 0, 0:NUM_CLASSES]
    tv_b = packed[:num_graphs, 0, NUM_CLASSES]
    bal_b = packed[:num_graphs, 0, NUM_CLASSES + 1]
    # batch-averaged losses (tv1+tv2 and bal1+bal2 already summed per graph in-kernel)
    return logits, jnp.mean(tv_b), jnp.mean(bal_b)


# --------------------------- parameters & inputs ---------------------------

def glorot(key, shape):
    fan_in, fan_out = shape
    lim = (6.0 / (fan_in + fan_out)) ** 0.5
    return jax.random.uniform(key, shape, jnp.float32, -lim, lim)


def init_params(key):
    ks = jax.random.split(key, 6)
    return {
        "w1": glorot(ks[0], (IN_FEATURES, MP_CHANNELS)), "b1": jnp.zeros((1, MP_CHANNELS), jnp.float32),
        "ws1": glorot(ks[1], (MP_CHANNELS, K1)),         "bs1": jnp.zeros((1, K1), jnp.float32),
        "w2": glorot(ks[2], (MP_CHANNELS, MP_CHANNELS)), "b2": jnp.zeros((1, MP_CHANNELS), jnp.float32),
        "ws2": glorot(ks[3], (MP_CHANNELS, K2)),         "bs2": jnp.zeros((1, K2), jnp.float32),
        "w3": glorot(ks[4], (MP_CHANNELS, MP_CHANNELS)), "b3": jnp.zeros((1, MP_CHANNELS), jnp.float32),
        "wout": glorot(ks[5], (MP_CHANNELS, NUM_CLASSES)), "bout": jnp.zeros((1, NUM_CLASSES), jnp.float32),
    }


def build_example(key):
    sizes = [10, 14]              # two small graphs
    num_graphs = len(sizes)
    n_max = 16
    total_nodes = sum(sizes)

    batch = jnp.array(sum(([g] * n for g, n in enumerate(sizes)), []), jnp.int32)

    edges = []
    offset = 0
    for n in sizes:               # deterministic bidirectional ring per graph
        for i in range(n):
            j = (i + 1) % n
            edges.append((offset + i, offset + j))
            edges.append((offset + j, offset + i))
        offset += n
    edge_index = jnp.array(edges, jnp.int32).T                  # (2, E)

    kx, kw = jax.random.split(key)
    x = jax.random.normal(kx, (total_nodes, IN_FEATURES), jnp.float32)
    edge_weight = jax.random.uniform(kw, (edge_index.shape[1],), jnp.float32, 0.5, 1.5)
    return x, edge_index, edge_weight, batch, num_graphs, n_max


if __name__ == "__main__":
    key = jax.random.PRNGKey(0)
    kp, kd = jax.random.split(key)
    params = init_params(kp)
    x, edge_index, edge_weight, batch, num_graphs, n_max = build_example(kd)

    fwd = jax.jit(classification_forward, static_argnums=(5, 6))
    logits, tv, bal = fwd(params, x, edge_index, edge_weight, batch, num_graphs, n_max)
    jax.block_until_ready((logits, tv, bal))

    assert logits.shape == (num_graphs, NUM_CLASSES)
    assert jnp.all(jnp.isfinite(logits)) and jnp.isfinite(tv) and jnp.isfinite(bal)
    print("KERNEL_OK")
</pallas_src>

<mosaic_0001>
module attributes {stable_mosaic.version = 11 : i64} {
  func.func @kernel(%arg0: i32, %arg1: memref<2xi32, #tpu.memory_space<smem>>, %arg2: memref<1x128x32xbf16, #tpu.memory_space<vmem>>, %arg3: memref<1x128x128xbf16, #tpu.memory_space<vmem>>, %arg4: memref<40x128xf32, #tpu.memory_space<vmem>>, %arg5: memref<1x1x8xf32, #tpu.memory_space<vmem>>) attributes {dimension_semantics = [#tpu.dimension_semantics<parallel>], iteration_bounds = array<i64: 2>, scalar_prefetch = 1 : i64, scratch_operands = 0 : i64, tpu.core_type = #tpu.core_type<tc>, window_params = [{transform_indices = @transform_0, window_bounds = array<i64: 1, 128, 32>}, {transform_indices = @transform_1, window_bounds = array<i64: 1, 128, 128>}, {pipeline_mode = #tpu.pipeline_mode<synchronous>, transform_indices = @transform_2, window_bounds = array<i64: 40, 128>}, {transform_indices = @transform_3, window_bounds = array<i64: 1, 1, 8>}]} {
    %c0 = arith.constant 0 : index
    %c0_0 = arith.constant 0 : index
    %0 = vector.load %arg4[%c0, %c0_0] : memref<40x128xf32, #tpu.memory_space<vmem>>, vector<32x32xf32>
    %c0_1 = arith.constant 0 : index
    %c32 = arith.constant 32 : index
    %1 = vector.load %arg4[%c0_1, %c32] : memref<40x128xf32, #tpu.memory_space<vmem>>, vector<32x32xf32>
    %c0_2 = arith.constant 0 : index
    %c64 = arith.constant 64 : index
    %2 = vector.load %arg4[%c0_2, %c64] : memref<40x128xf32, #tpu.memory_space<vmem>>, vector<32x8xf32>
    %c0_3 = arith.constant 0 : index
    %c72 = arith.constant 72 : index
    %3 = vector.load %arg4[%c0_3, %c72] : memref<40x128xf32, #tpu.memory_space<vmem>>, vector<32x4xf32>
    %c0_4 = arith.constant 0 : index
    %c76 = arith.constant 76 : index
    %4 = vector.load %arg4[%c0_4, %c76] : memref<40x128xf32, #tpu.memory_space<vmem>>, vector<32x2xf32>
    %c32_5 = arith.constant 32 : index
    %c0_6 = arith.constant 0 : index
    %5 = vector.load %arg4[%c32_5, %c0_6] : memref<40x128xf32, #tpu.memory_space<vmem>>, vector<1x32xf32>
    %c33 = arith.constant 33 : index
    %c0_7 = arith.constant 0 : index
    %6 = vector.load %arg4[%c33, %c0_7] : memref<40x128xf32, #tpu.memory_space<vmem>>, vector<1x32xf32>
    %c34 = arith.constant 34 : index
    %c0_8 = arith.constant 0 : index
    %7 = vector.load %arg4[%c34, %c0_8] : memref<40x128xf32, #tpu.memory_space<vmem>>, vector<1x32xf32>
    %c35 = arith.constant 35 : index
    %c0_9 = arith.constant 0 : index
    %8 = vector.load %arg4[%c35, %c0_9] : memref<40x128xf32, #tpu.memory_space<vmem>>, vector<1x8xf32>
    %c36 = arith.constant 36 : index
    %c0_10 = arith.constant 0 : index
    %9 = vector.load %arg4[%c36, %c0_10] : memref<40x128xf32, #tpu.memory_space<vmem>>, vector<1x4xf32>
    %c37 = arith.constant 37 : index
    %c0_11 = arith.constant 0 : index
    %10 = vector.load %arg4[%c37, %c0_11] : memref<40x128xf32, #tpu.memory_space<vmem>>, vector<1x2xf32>
    %11 = tpu.iota {dimensions = array<i32: 0>} : vector<128x1xi32>
    %c1_i32 = arith.constant 1 : i32
    %12 = arith.muli %arg0, %c1_i32 : i32
    %cst = arith.constant 0.000000e+00 : f32
    %13 = vector.broadcast %cst : f32 to vector<1x1x8xf32>
    %c0_12 = arith.constant 0 : index
    %c0_13 = arith.constant 0 : index
    %c0_14 = arith.constant 0 : index
    %14 = vector.load %arg5[%c0_12, %c0_13, %c0_14] : memref<1x1x8xf32, #tpu.memory_space<vmem>>, vector<1x1x8xf32>
    tpu.vector_store %arg5[%c0_12, %c0_13, %c0_14], %13 {strides = array<i32>} : memref<1x1x8xf32, #tpu.memory_space<vmem>>, vector<1x1x8xf32>,
    %c0_i32 = arith.constant 0 : i32
    %15 = arith.addi %12, %c0_i32 : i32
    %16 = arith.index_cast %15 : i32 to index
    %17 = memref.load %arg1[%16] : memref<2xi32, #tpu.memory_space<smem>>
    %18 = vector.broadcast %17 : i32 to vector<128x1xi32>
    %19 = arith.cmpi slt, %11, %18 : vector<128x1xi32>
    %20 = arith.extui %19 : vector<128x1xi1> to vector<128x1xi32>
    %21 = arith.sitofp %20 : vector<128x1xi32> to vector<128x1xf32>
    %c0_15 = arith.constant 0 : index
    %c0_16 = arith.constant 0 : index
    %c0_17 = arith.constant 0 : index
    %22 = vector.load %arg3[%c0_15, %c0_16, %c0_17] : memref<1x128x128xbf16, #tpu.memory_space<vmem>>, vector<1x128x128xbf16>
    %23 = vector.shape_cast %22 : vector<1x128x128xbf16> to vector<128x128xbf16>
    %c0_18 = arith.constant 0 : index
    %c0_19 = arith.constant 0 : index
    %c0_20 = arith.constant 0 : index
    %24 = vector.load %arg2[%c0_18, %c0_19, %c0_20] : memref<1x128x32xbf16, #tpu.memory_space<vmem>>, vector<1x128x32xbf16>
    %25 = vector.shape_cast %24 : vector<1x128x32xbf16> to vector<128x32xbf16>
    %cst_21 = arith.constant dense<0.000000e+00> : vector<128x32xf32>
    %26 = tpu.matmul %23, %25, %cst_21 {dimension_numbers = #tpu.dot_dimension_numbers<[1], [0], [0], [1], [0, 0, 1, 1], [], []>} : vector<128x128xbf16>, vector<128x32xbf16>, vector<128x32xf32> -> vector<128x32xf32>
    %27 = arith.extf %25 : vector<128x32xbf16> to vector<128x32xf32>
    %28 = arith.addf %26, %27 : vector<128x32xf32>
    %29 = vector.broadcast %5 : vector<1x32xf32> to vector<128x32xf32>
    %30 = arith.addf %28, %29 : vector<128x32xf32>
    %cst_22 = arith.constant 0.000000e+00 : f32
    %31 = vector.broadcast %cst_22 : f32 to vector<128x32xf32>
    %32 = arith.maximumf %30, %31 : vector<128x32xf32>
    %33 = vector.broadcast %21 : vector<128x1xf32> to vector<128x32xf32>
    %34 = arith.mulf %32, %33 : vector<128x32xf32>
    %35 = arith.truncf %34 : vector<128x32xf32> to vector<128x32xbf16>
    %36 = arith.truncf %2 : vector<32x8xf32> to vector<32x8xbf16>
    %cst_23 = arith.constant dense<0.000000e+00> : vector<128x8xf32>
    %37 = tpu.matmul %35, %36, %cst_23 {dimension_numbers = #tpu.dot_dimension_numbers<[1], [0], [0], [1], [0, 0, 1, 1], [], []>} : vector<128x32xbf16>, vector<32x8xbf16>, vector<128x8xf32> -> vector<128x8xf32>
    %38 = vector.broadcast %8 : vector<1x8xf32> to vector<128x8xf32>
    %39 = arith.addf %37, %38 : vector<128x8xf32>
    %cst_24 = arith.constant dense<0xFF800000> : vector<128xf32>
    %40 = vector.multi_reduction <maximumf>, %39, %cst_24 [1] : vector<128x8xf32> to vector<128xf32>
    %41 = vector.shape_cast %40 : vector<128xf32> to vector<128x1xf32>
    %42 = vector.broadcast %41 : vector<128x1xf32> to vector<128x8xf32>
    %43 = arith.subf %39, %42 : vector<128x8xf32>
    %44 = math.exp %43 : vector<128x8xf32>
    %cst_25 = arith.constant dense<0.000000e+00> : vector<128xf32>
    %45 = vector.multi_reduction <add>, %44, %cst_25 [1] : vector<128x8xf32> to vector<128xf32>
    %46 = vector.shape_cast %45 : vector<128xf32> to vector<128x1xf32>
    %47 = tpu.reciprocal %46 {approx = true} : vector<128x1xf32> -> vector<128x1xf32>
    %48 = vector.broadcast %47 : vector<128x1xf32> to vector<128x8xf32>
    %49 = arith.mulf %44, %48 : vector<128x8xf32>
    %50 = vector.broadcast %21 : vector<128x1xf32> to vector<128x8xf32>
    %51 = arith.mulf %49, %50 : vector<128x8xf32>
    %52 = tpu.transpose %51, [1, 0] : vector<128x8xf32> -> vector<8x128xf32>
    %53 = arith.truncf %51 : vector<128x8xf32> to vector<128x8xbf16>
    %54 = arith.truncf %52 : vector<8x128xf32> to vector<8x128xbf16>
    %55 = arith.truncf %34 : vector<128x32xf32> to vector<128x32xbf16>
    %cst_26 = arith.constant dense<0.000000e+00> : vector<8x32xf32>
    %56 = tpu.matmul %54, %55, %cst_26 {dimension_numbers = #tpu.dot_dimension_numbers<[1], [0], [0], [1], [0, 0, 1, 1], [], []>} : vector<8x128xbf16>, vector<128x32xbf16>, vector<8x32xf32> -> vector<8x32xf32>
    %cst_27 = arith.constant dense<0.000000e+00> : vector<8x128xf32>
    %57 = tpu.matmul %54, %23, %cst_27 {dimension_numbers = #tpu.dot_dimension_numbers<[1], [0], [0], [1], [0, 0, 1, 1], [], []>} : vector<8x128xbf16>, vector<128x128xbf16>, vector<8x128xf32> -> vector<8x128xf32>
    %58 = arith.truncf %57 : vector<8x128xf32> to vector<8x128xbf16>
    %cst_28 = arith.constant dense<0.000000e+00> : vector<8x8xf32>
    %59 = tpu.matmul %58, %53, %cst_28 {dimension_numbers = #tpu.dot_dimension_numbers<[1], [0], [0], [1], [0, 0, 1, 1], [], []>} : vector<8x128xbf16>, vector<128x8xbf16>, vector<8x8xf32> -> vector<8x8xf32>
    %60 = vector.extract_strided_slice %51 {offsets = [0, 0], sizes = [128, 1], strides = [1, 1]} : vector<128x8xf32> to vector<128x1xf32>
    %61 = vector.extract_strided_slice %52 {offsets = [0, 0], sizes = [1, 128], strides = [1, 1]} : vector<8x128xf32> to vector<1x128xf32>
    %62 = vector.broadcast %60 : vector<128x1xf32> to vector<128x128xf32>
    %63 = vector.broadcast %61 : vector<1x128xf32> to vector<128x128xf32>
    %64 = arith.subf %62, %63 : vector<128x128xf32>
    %65 = math.absf %64 : vector<128x128xf32>
    %66 = vector.extract_strided_slice %51 {offsets = [0, 1], sizes = [128, 1], strides = [1, 1]} : vector<128x8xf32> to vector<128x1xf32>
    %67 = vector.extract_strided_slice %52 {offsets = [1, 0], sizes = [1, 128], strides = [1, 1]} : vector<8x128xf32> to vector<1x128xf32>
    %68 = vector.broadcast %66 : vector<128x1xf32> to vector<128x128xf32>
    %69 = vector.broadcast %67 : vector<1x128xf32> to vector<128x128xf32>
    %70 = arith.subf %68, %69 : vector<128x128xf32>
    %71 = math.absf %70 : vector<128x128xf32>
    %72 = arith.addf %65, %71 : vector<128x128xf32>
    %73 = vector.extract_strided_slice %51 {offsets = [0, 2], sizes = [128, 1], strides = [1, 1]} : vector<128x8xf32> to vector<128x1xf32>
    %74 = vector.extract_strided_slice %52 {offsets = [2, 0], sizes = [1, 128], strides = [1, 1]} : vector<8x128xf32> to vector<1x128xf32>
    %75 = vector.broadcast %73 : vector<128x1xf32> to vector<128x128xf32>
    %76 = vector.broadcast %74 : vector<1x128xf32> to vector<128x128xf32>
    %77 = arith.subf %75, %76 : vector<128x128xf32>
    %78 = math.absf %77 : vector<128x128xf32>
    %79 = arith.addf %72, %78 : vector<128x128xf32>
    %80 = vector.extract_strided_slice %51 {offsets = [0, 3], sizes = [128, 1], strides = [1, 1]} : vector<128x8xf32> to vector<128x1xf32>
    %81 = vector.extract_strided_slice %52 {offsets = [3, 0], sizes = [1, 128], strides = [1, 1]} : vector<8x128xf32> to vector<1x128xf32>
    %82 = vector.broadcast %80 : vector<128x1xf32> to vector<128x128xf32>
    %83 = vector.broadcast %81 : vector<1x128xf32> to vector<128x128xf32>
    %84 = arith.subf %82, %83 : vector<128x128xf32>
    %85 = math.absf %84 : vector<128x128xf32>
    %86 = arith.addf %79, %85 : vector<128x128xf32>
    %87 = vector.extract_strided_slice %51 {offsets = [0, 4], sizes = [128, 1], strides = [1, 1]} : vector<128x8xf32> to vector<128x1xf32>
    %88 = vector.extract_strided_slice %52 {offsets = [4, 0], sizes = [1, 128], strides = [1, 1]} : vector<8x128xf32> to vector<1x128xf32>
    %89 = vector.broadcast %87 : vector<128x1xf32> to vector<128x128xf32>
    %90 = vector.broadcast %88 : vector<1x128xf32> to vector<128x128xf32>
    %91 = arith.subf %89, %90 : vector<128x128xf32>
    %92 = math.absf %91 : vector<128x128xf32>
    %93 = arith.addf %86, %92 : vector<128x128xf32>
    %94 = vector.extract_strided_slice %51 {offsets = [0, 5], sizes = [128, 1], strides = [1, 1]} : vector<128x8xf32> to vector<128x1xf32>
    %95 = vector.extract_strided_slice %52 {offsets = [5, 0], sizes = [1, 128], strides = [1, 1]} : vector<8x128xf32> to vector<1x128xf32>
    %96 = vector.broadcast %94 : vector<128x1xf32> to vector<128x128xf32>
    %97 = vector.broadcast %95 : vector<1x128xf32> to vector<128x128xf32>
    %98 = arith.subf %96, %97 : vector<128x128xf32>
    %99 = math.absf %98 : vector<128x128xf32>
    %100 = arith.addf %93, %99 : vector<128x128xf32>
    %101 = vector.extract_strided_slice %51 {offsets = [0, 6], sizes = [128, 1], strides = [1, 1]} : vector<128x8xf32> to vector<128x1xf32>
    %102 = vector.extract_strided_slice %52 {offsets = [6, 0], sizes = [1, 128], strides = [1, 1]} : vector<8x128xf32> to vector<1x128xf32>
    %103 = vector.broadcast %101 : vector<128x1xf32> to vector<128x128xf32>
    %104 = vector.broadcast %102 : vector<1x128xf32> to vector<128x128xf32>
    %105 = arith.subf %103, %104 : vector<128x128xf32>
    %106 = math.absf %105 : vector<128x128xf32>
    %107 = arith.addf %100, %106 : vector<128x128xf32>
    %108 = vector.extract_strided_slice %51 {offsets = [0, 7], sizes = [128, 1], strides = [1, 1]} : vector<128x8xf32> to vector<128x1xf32>
    %109 = vector.extract_strided_slice %52 {offsets = [7, 0], sizes = [1, 128], strides = [1, 1]} : vector<8x128xf32> to vector<1x128xf32>
    %110 = vector.broadcast %108 : vector<128x1xf32> to vector<128x128xf32>
    %111 = vector.broadcast %109 : vector<1x128xf32> to vector<128x128xf32>
    %112 = arith.subf %110, %111 : vector<128x128xf32>
    %113 = math.absf %112 : vector<128x128xf32>
    %114 = arith.addf %107, %113 : vector<128x128xf32>
    %115 = arith.extf %23 : vector<128x128xbf16> to vector<128x128xf32>
    %116 = vector.shape_cast %115 : vector<128x128xf32> to vector<1x128x128xf32>
    %cst_29 = arith.constant dense<0.000000e+00> : vector<1xf32>
    %117 = vector.multi_reduction <add>, %116, %cst_29 [1, 2] : vector<1x128x128xf32> to vector<1xf32>
    %118 = vector.shape_cast %117 : vector<1xf32> to vector<1x1x1xf32>
    %119 = vector.extract %118[0, 0, 0] : f32 from vector<1x1x1xf32>
    %120 = vector.broadcast %119 : f32 to vector<1x1xf32>
    %121 = arith.mulf %115, %114 : vector<128x128xf32>
    %122 = vector.shape_cast %121 : vector<128x128xf32> to vector<1x128x128xf32>
    %cst_30 = arith.constant dense<0.000000e+00> : vector<1xf32>
    %123 = vector.multi_reduction <add>, %122, %cst_30 [1, 2] : vector<1x128x128xf32> to vector<1xf32>
    %124 = vector.shape_cast %123 : vector<1xf32> to vector<1x1x1xf32>
    %125 = vector.extract %124[0, 0, 0] : f32 from vector<1x1x1xf32>
    %126 = vector.broadcast %125 : f32 to vector<1x1xf32>
    %cst_31 = arith.constant 2.000000e+00 : f32
    %127 = vector.broadcast %cst_31 : f32 to vector<1x1xf32>
    %128 = arith.mulf %127, %120 : vector<1x1xf32>
    %cst_32 = arith.constant 9.99999971E-10 : f32
    %129 = vector.broadcast %cst_32 : f32 to vector<1x1xf32>
    %130 = arith.addf %128, %129 : vector<1x1xf32>
    %131 = tpu.reciprocal %130 {approx = true} : vector<1x1xf32> -> vector<1x1xf32>
    %132 = arith.mulf %126, %131 : vector<1x1xf32>
    %cst_33 = arith.constant dense<0.000000e+00> : vector<8x8xf32>
    %133 = tpu.matmul %54, %53, %cst_33 {dimension_numbers = #tpu.dot_dimension_numbers<[1], [0], [0], [1], [0, 0, 1, 1], [], []>} : vector<8x128xbf16>, vector<128x8xbf16>, vector<8x8xf32> -> vector<8x8xf32>
    %134 = tpu.iota {dimensions = array<i32: 0>} : vector<8x8xi32>
    %135 = tpu.iota {dimensions = array<i32: 1>} : vector<8x8xi32>
    %136 = arith.cmpi eq, %134, %135 : vector<8x8xi32>
    %137 = arith.extui %136 : vector<8x8xi1> to vector<8x8xi32>
    %138 = arith.sitofp %137 : vector<8x8xi32> to vector<8x8xf32>
    %139 = arith.mulf %133, %133 : vector<8x8xf32>
    %140 = vector.shape_cast %139 : vector<8x8xf32> to vector<1x8x8xf32>
    %cst_34 = arith.constant dense<0.000000e+00> : vector<1xf32>
    %141 = vector.multi_reduction <add>, %140, %cst_34 [1, 2] : vector<1x8x8xf32> to vector<1xf32>
    %142 = vector.shape_cast %141 : vector<1xf32> to vector<1x1x1xf32>
    %143 = vector.extract %142[0, 0, 0] : f32 from vector<1x1x1xf32>
    %144 = vector.broadcast %143 : f32 to vector<1x1xf32>
    %cst_35 = arith.constant 9.99999996E-13 : f32
    %145 = vector.broadcast %cst_35 : f32 to vector<1x1xf32>
    %146 = arith.addf %144, %145 : vector<1x1xf32>
    %147 = math.sqrt %146 : vector<1x1xf32>
    %148 = tpu.reciprocal %147 {approx = true} : vector<1x1xf32> -> vector<1x1xf32>
    %149 = vector.broadcast %148 : vector<1x1xf32> to vector<8x8xf32>
    %150 = arith.mulf %133, %149 : vector<8x8xf32>
    %cst_36 = arith.constant 0.353553385 : f32
    %151 = vector.broadcast %cst_36 : f32 to vector<8x8xf32>
    %152 = arith.mulf %138, %151 : vector<8x8xf32>
    %153 = arith.subf %150, %152 : vector<8x8xf32>
    %154 = arith.mulf %153, %153 : vector<8x8xf32>
    %155 = vector.shape_cast %154 : vector<8x8xf32> to vector<1x8x8xf32>
    %cst_37 = arith.constant dense<0.000000e+00> : vector<1xf32>
    %156 = vector.multi_reduction <add>, %155, %cst_37 [1, 2] : vector<1x8x8xf32> to vector<1xf32>
    %157 = vector.shape_cast %156 : vector<1xf32> to vector<1x1x1xf32>
    %158 = vector.extract %157[0, 0, 0] : f32 from vector<1x1x1xf32>
    %159 = vector.broadcast %158 : f32 to vector<1x1xf32>
    %cst_38 = arith.constant 9.99999996E-13 : f32
    %160 = vector.broadcast %cst_38 : f32 to vector<1x1xf32>
    %161 = arith.addf %159, %160 : vector<1x1xf32>
    %162 = math.sqrt %161 : vector<1x1xf32>
    %163 = arith.truncf %56 : vector<8x32xf32> to vector<8x32xbf16>
    %164 = arith.truncf %0 : vector<32x32xf32> to vector<32x32xbf16>
    %cst_39 = arith.constant dense<0.000000e+00> : vector<8x32xf32>
    %165 = tpu.matmul %163, %164, %cst_39 {dimension_numbers = #tpu.dot_dimension_numbers<[1], [0], [0], [1], [0, 0, 1, 1], [], []>} : vector<8x32xbf16>, vector<32x32xbf16>, vector<8x32xf32> -> vector<8x32xf32>
    %166 = arith.truncf %59 : vector<8x8xf32> to vector<8x8xbf16>
    %167 = arith.truncf %165 : vector<8x32xf32> to vector<8x32xbf16>
    %cst_40 = arith.constant dense<0.000000e+00> : vector<8x32xf32>
    %168 = tpu.matmul %166, %167, %cst_40 {dimension_numbers = #tpu.dot_dimension_numbers<[1], [0], [0], [1], [0, 0, 1, 1], [], []>} : vector<8x8xbf16>, vector<8x32xbf16>, vector<8x32xf32> -> vector<8x32xf32>
    %169 = arith.addf %168, %165 : vector<8x32xf32>
    %170 = vector.broadcast %6 : vector<1x32xf32> to vector<8x32xf32>
    %171 = arith.addf %169, %170 : vector<8x32xf32>
    %cst_41 = arith.constant 0.000000e+00 : f32
    %172 = vector.broadcast %cst_41 : f32 to vector<8x32xf32>
    %173 = arith.maximumf %171, %172 : vector<8x32xf32>
    %174 = arith.truncf %173 : vector<8x32xf32> to vector<8x32xbf16>
    %175 = arith.truncf %3 : vector<32x4xf32> to vector<32x4xbf16>
    %cst_42 = arith.constant dense<0.000000e+00> : vector<8x4xf32>
    %176 = tpu.matmul %174, %175, %cst_42 {dimension_numbers = #tpu.dot_dimension_numbers<[1], [0], [0], [1], [0, 0, 1, 1], [], []>} : vector<8x32xbf16>, vector<32x4xbf16>, vector<8x4xf32> -> vector<8x4xf32>
    %177 = vector.broadcast %9 : vector<1x4xf32> to vector<8x4xf32>
    %178 = arith.addf %176, %177 : vector<8x4xf32>
    %cst_43 = arith.constant dense<0xFF800000> : vector<8xf32>
    %179 = vector.multi_reduction <maximumf>, %178, %cst_43 [1] : vector<8x4xf32> to vector<8xf32>
    %180 = vector.shape_cast %179 : vector<8xf32> to vector<8x1xf32>
    %181 = vector.broadcast %180 : vector<8x1xf32> to vector<8x4xf32>
    %182 = arith.subf %178, %181 : vector<8x4xf32>
    %183 = math.exp %182 : vector<8x4xf32>
    %cst_44 = arith.constant dense<0.000000e+00> : vector<8xf32>
    %184 = vector.multi_reduction <add>, %183, %cst_44 [1] : vector<8x4xf32> to vector<8xf32>
    %185 = vector.shape_cast %184 : vector<8xf32> to vector<8x1xf32>
    %186 = tpu.reciprocal %185 {approx = true} : vector<8x1xf32> -> vector<8x1xf32>
    %187 = vector.broadcast %186 : vector<8x1xf32> to vector<8x4xf32>
    %188 = arith.mulf %183, %187 : vector<8x4xf32>
    %189 = tpu.transpose %188, [1, 0] : vector<8x4xf32> -> vector<4x8xf32>
    %190 = arith.truncf %188 : vector<8x4xf32> to vector<8x4xbf16>
    %191 = arith.truncf %189 : vector<4x8xf32> to vector<4x8xbf16>
    %192 = arith.truncf %173 : vector<8x32xf32> to vector<8x32xbf16>
    %cst_45 = arith.constant dense<0.000000e+00> : vector<4x32xf32>
    %193 = tpu.matmul %191, %192, %cst_45 {dimension_numbers = #tpu.dot_dimension_numbers<[1], [0], [0], [1], [0, 0, 1, 1], [], []>} : vector<4x8xbf16>, vector<8x32xbf16>, vector<4x32xf32> -> vector<4x32xf32>
    %194 = arith.truncf %59 : vector<8x8xf32> to vector<8x8xbf16>
    %cst_46 = arith.constant dense<0.000000e+00> : vector<4x8xf32>
    %195 = tpu.matmul %191, %194, %cst_46 {dimension_numbers = #tpu.dot_dimension_numbers<[1], [0], [0], [1], [0, 0, 1, 1], [], []>} : vector<4x8xbf16>, vector<8x8xbf16>, vector<4x8xf32> -> vector<4x8xf32>
    %196 = arith.truncf %195 : vector<4x8xf32> to vector<4x8xbf16>
    %cst_47 = arith.constant dense<0.000000e+00> : vector<4x4xf32>
    %197 = tpu.matmul %196, %190, %cst_47 {dimension_numbers = #tpu.dot_dimension_numbers<[1], [0], [0], [1], [0, 0, 1, 1], [], []>} : vector<4x8xbf16>, vector<8x4xbf16>, vector<4x4xf32> -> vector<4x4xf32>
    %198 = vector.extract_strided_slice %188 {offsets = [0, 0], sizes = [8, 1], strides = [1, 1]} : vector<8x4xf32> to vector<8x1xf32>
    %199 = vector.extract_strided_slice %189 {offsets = [0, 0], sizes = [1, 8], strides = [1, 1]} : vector<4x8xf32> to vector<1x8xf32>
    %200 = vector.broadcast %198 : vector<8x1xf32> to vector<8x8xf32>
    %201 = vector.broadcast %199 : vector<1x8xf32> to vector<8x8xf32>
    %202 = arith.subf %200, %201 : vector<8x8xf32>
    %203 = math.absf %202 : vector<8x8xf32>
    %204 = vector.extract_strided_slice %188 {offsets = [0, 1], sizes = [8, 1], strides = [1, 1]} : vector<8x4xf32> to vector<8x1xf32>
    %205 = vector.extract_strided_slice %189 {offsets = [1, 0], sizes = [1, 8], strides = [1, 1]} : vector<4x8xf32> to vector<1x8xf32>
    %206 = vector.broadcast %204 : vector<8x1xf32> to vector<8x8xf32>
    %207 = vector.broadcast %205 : vector<1x8xf32> to vector<8x8xf32>
    %208 = arith.subf %206, %207 : vector<8x8xf32>
    %209 = math.absf %208 : vector<8x8xf32>
    %210 = arith.addf %203, %209 : vector<8x8xf32>
    %211 = vector.extract_strided_slice %188 {offsets = [0, 2], sizes = [8, 1], strides = [1, 1]} : vector<8x4xf32> to vector<8x1xf32>
    %212 = vector.extract_strided_slice %189 {offsets = [2, 0], sizes = [1, 8], strides = [1, 1]} : vector<4x8xf32> to vector<1x8xf32>
    %213 = vector.broadcast %211 : vector<8x1xf32> to vector<8x8xf32>
    %214 = vector.broadcast %212 : vector<1x8xf32> to vector<8x8xf32>
    %215 = arith.subf %213, %214 : vector<8x8xf32>
    %216 = math.absf %215 : vector<8x8xf32>
    %217 = arith.addf %210, %216 : vector<8x8xf32>
    %218 = vector.extract_strided_slice %188 {offsets = [0, 3], sizes = [8, 1], strides = [1, 1]} : vector<8x4xf32> to vector<8x1xf32>
    %219 = vector.extract_strided_slice %189 {offsets = [3, 0], sizes = [1, 8], strides = [1, 1]} : vector<4x8xf32> to vector<1x8xf32>
    %220 = vector.broadcast %218 : vector<8x1xf32> to vector<8x8xf32>
    %221 = vector.broadcast %219 : vector<1x8xf32> to vector<8x8xf32>
    %222 = arith.subf %220, %221 : vector<8x8xf32>
    %223 = math.absf %222 : vector<8x8xf32>
    %224 = arith.addf %217, %223 : vector<8x8xf32>
    %225 = vector.shape_cast %59 : vector<8x8xf32> to vector<1x8x8xf32>
    %cst_48 = arith.constant dense<0.000000e+00> : vector<1xf32>
    %226 = vector.multi_reduction <add>, %225, %cst_48 [1, 2] : vector<1x8x8xf32> to vector<1xf32>
    %227 = vector.shape_cast %226 : vector<1xf32> to vector<1x1x1xf32>
    %228 = vector.extract %227[0, 0, 0] : f32 from vector<1x1x1xf32>
    %229 = vector.broadcast %228 : f32 to vector<1x1xf32>
    %230 = arith.mulf %59, %224 : vector<8x8xf32>
    %231 = vector.shape_cast %230 : vector<8x8xf32> to vector<1x8x8xf32>
    %cst_49 = arith.constant dense<0.000000e+00> : vector<1xf32>
    %232 = vector.multi_reduction <add>, %231, %cst_49 [1, 2] : vector<1x8x8xf32> to vector<1xf32>
    %233 = vector.shape_cast %232 : vector<1xf32> to vector<1x1x1xf32>
    %234 = vector.extract %233[0, 0, 0] : f32 from vector<1x1x1xf32>
    %235 = vector.broadcast %234 : f32 to vector<1x1xf32>
    %cst_50 = arith.constant 2.000000e+00 : f32
    %236 = vector.broadcast %cst_50 : f32 to vector<1x1xf32>
    %237 = arith.mulf %236, %229 : vector<1x1xf32>
    %cst_51 = arith.constant 9.99999971E-10 : f32
    %238 = vector.broadcast %cst_51 : f32 to vector<1x1xf32>
    %239 = arith.addf %237, %238 : vector<1x1xf32>
    %240 = tpu.reciprocal %239 {approx = true} : vector<1x1xf32> -> vector<1x1xf32>
    %241 = arith.mulf %235, %240 : vector<1x1xf32>
    %cst_52 = arith.constant dense<0.000000e+00> : vector<4x4xf32>
    %242 = tpu.matmul %191, %190, %cst_52 {dimension_numbers = #tpu.dot_dimension_numbers<[1], [0], [0], [1], [0, 0, 1, 1], [], []>} : vector<4x8xbf16>, vector<8x4xbf16>, vector<4x4xf32> -> vector<4x4xf32>
    %243 = tpu.iota {dimensions = array<i32: 0>} : vector<4x4xi32>
    %244 = tpu.iota {dimensions = array<i32: 1>} : vector<4x4xi32>
    %245 = arith.cmpi eq, %243, %244 : vector<4x4xi32>
    %246 = arith.extui %245 : vector<4x4xi1> to vector<4x4xi32>
    %247 = arith.sitofp %246 : vector<4x4xi32> to vector<4x4xf32>
    %248 = arith.mulf %242, %242 : vector<4x4xf32>
    %249 = vector.shape_cast %248 : vector<4x4xf32> to vector<1x4x4xf32>
    %cst_53 = arith.constant dense<0.000000e+00> : vector<1xf32>
    %250 = vector.multi_reduction <add>, %249, %cst_53 [1, 2] : vector<1x4x4xf32> to vector<1xf32>
    %251 = vector.shape_cast %250 : vector<1xf32> to vector<1x1x1xf32>
    %252 = vector.extract %251[0, 0, 0] : f32 from vector<1x1x1xf32>
    %253 = vector.broadcast %252 : f32 to vector<1x1xf32>
    %cst_54 = arith.constant 9.99999996E-13 : f32
    %254 = vector.broadcast %cst_54 : f32 to vector<1x1xf32>
    %255 = arith.addf %253, %254 : vector<1x1xf32>
    %256 = math.sqrt %255 : vector<1x1xf32>
    %257 = tpu.reciprocal %256 {approx = true} : vector<1x1xf32> -> vector<1x1xf32>
    %258 = vector.broadcast %257 : vector<1x1xf32> to vector<4x4xf32>
    %259 = arith.mulf %242, %258 : vector<4x4xf32>
    %cst_55 = arith.constant 5.000000e-01 : f32
    %260 = vector.broadcast %cst_55 : f32 to vector<4x4xf32>
    %261 = arith.mulf %247, %260 : vector<4x4xf32>
    %262 = arith.subf %259, %261 : vector<4x4xf32>
    %263 = arith.mulf %262, %262 : vector<4x4xf32>
    %264 = vector.shape_cast %263 : vector<4x4xf32> to vector<1x4x4xf32>
    %cst_56 = arith.constant dense<0.000000e+00> : vector<1xf32>
    %265 = vector.multi_reduction <add>, %264, %cst_56 [1, 2] : vector<1x4x4xf32> to vector<1xf32>
    %266 = vector.shape_cast %265 : vector<1xf32> to vector<1x1x1xf32>
    %267 = vector.extract %266[0, 0, 0] : f32 from vector<1x1x1xf32>
    %268 = vector.broadcast %267 : f32 to vector<1x1xf32>
    %cst_57 = arith.constant 9.99999996E-13 : f32
    %269 = vector.broadcast %cst_57 : f32 to vector<1x1xf32>
    %270 = arith.addf %268, %269 : vector<1x1xf32>
    %271 = math.sqrt %270 : vector<1x1xf32>
    %272 = arith.truncf %193 : vector<4x32xf32> to vector<4x32xbf16>
    %273 = arith.truncf %1 : vector<32x32xf32> to vector<32x32xbf16>
    %cst_58 = arith.constant dense<0.000000e+00> : vector<4x32xf32>
    %274 = tpu.matmul %272, %273, %cst_58 {dimension_numbers = #tpu.dot_dimension_numbers<[1], [0], [0], [1], [0, 0, 1, 1], [], []>} : vector<4x32xbf16>, vector<32x32xbf16>, vector<4x32xf32> -> vector<4x32xf32>
    %275 = arith.truncf %197 : vector<4x4xf32> to vector<4x4xbf16>
    %276 = arith.truncf %274 : vector<4x32xf32> to vector<4x32xbf16>
    %cst_59 = arith.constant dense<0.000000e+00> : vector<4x32xf32>
    %277 = tpu.matmul %275, %276, %cst_59 {dimension_numbers = #tpu.dot_dimension_numbers<[1], [0], [0], [1], [0, 0, 1, 1], [], []>} : vector<4x4xbf16>, vector<4x32xbf16>, vector<4x32xf32> -> vector<4x32xf32>
    %278 = arith.addf %277, %274 : vector<4x32xf32>
    %279 = vector.broadcast %7 : vector<1x32xf32> to vector<4x32xf32>
    %280 = arith.addf %278, %279 : vector<4x32xf32>
    %cst_60 = arith.constant 0.000000e+00 : f32
    %281 = vector.broadcast %cst_60 : f32 to vector<4x32xf32>
    %282 = arith.maximumf %280, %281 : vector<4x32xf32>
    %cst_61 = arith.constant dense<0.000000e+00> : vector<32xf32>
    %283 = vector.multi_reduction <add>, %282, %cst_61 [0] : vector<4x32xf32> to vector<32xf32>
    %284 = vector.shape_cast %283 : vector<32xf32> to vector<1x32xf32>
    %cst_62 = arith.constant 4.000000e+00 : f32
    %285 = vector.broadcast %cst_62 : f32 to vector<1x32xf32>
    %286 = arith.divf %284, %285 : vector<1x32xf32>
    %cst_63 = arith.constant dense<0.000000e+00> : vector<1x2xf32>
    %287 = tpu.matmul %286, %4, %cst_63 {dimension_numbers = #tpu.dot_dimension_numbers<[1], [0], [0], [1], [0, 0, 1, 1], [], []>} : vector<1x32xf32>, vector<32x2xf32>, vector<1x2xf32> -> vector<1x2xf32>
    %288 = arith.addf %287, %10 : vector<1x2xf32>
    %c0_64 = arith.constant 0 : index
    %c0_65 = arith.constant 0 : index
    %c0_66 = arith.constant 0 : index
    %289 = vector.load %arg5[%c0_64, %c0_65, %c0_66] : memref<1x1x8xf32, #tpu.memory_space<vmem>>, vector<1x1x2xf32>
    %290 = vector.shape_cast %289 : vector<1x1x2xf32> to vector<1x2xf32>
    %291 = vector.shape_cast %288 : vector<1x2xf32> to vector<1x1x2xf32>
    tpu.vector_store %arg5[%c0_64, %c0_65, %c0_66], %291 {strides = array<i32>} : memref<1x1x8xf32, #tpu.memory_space<vmem>>, vector<1x1x2xf32>,
    %292 = arith.addf %132, %241 : vector<1x1xf32>
    %c0_67 = arith.constant 0 : index
    %c0_68 = arith.constant 0 : index
    %c2 = arith.constant 2 : index
    %293 = vector.load %arg5[%c0_67, %c0_68, %c2] : memref<1x1x8xf32, #tpu.memory_space<vmem>>, vector<1x1x1xf32>
    %294 = vector.shape_cast %293 : vector<1x1x1xf32> to vector<1x1xf32>
    %295 = vector.shape_cast %292 : vector<1x1xf32> to vector<1x1x1xf32>
    tpu.vector_store %arg5[%c0_67, %c0_68, %c2], %295 {strides = array<i32>} : memref<1x1x8xf32, #tpu.memory_space<vmem>>, vector<1x1x1xf32>,
    %296 = arith.addf %162, %271 : vector<1x1xf32>
    %c0_69 = arith.constant 0 : index
    %c0_70 = arith.constant 0 : index
    %c3 = arith.constant 3 : index
    %297 = vector.load %arg5[%c0_69, %c0_70, %c3] : memref<1x1x8xf32, #tpu.memory_space<vmem>>, vector<1x1x1xf32>
    %298 = vector.shape_cast %297 : vector<1x1x1xf32> to vector<1x1xf32>
    %299 = vector.shape_cast %296 : vector<1x1xf32> to vector<1x1x1xf32>
    tpu.vector_store %arg5[%c0_69, %c0_70, %c3], %299 {strides = array<i32>} : memref<1x1x8xf32, #tpu.memory_space<vmem>>, vector<1x1x1xf32>,
    return
  }
  func.func @transform_0(%arg0: i32, %arg1: memref<2xi32, #tpu.memory_space<smem>>) -> (i32, i32, i32) {
    %c0_i32 = arith.constant 0 : i32
    %c0_i32_0 = arith.constant 0 : i32
    %c0_i32_1 = arith.constant 0 : i32
    return %arg0, %c0_i32, %c0_i32_0 : i32, i32, i32
  }
  func.func @transform_1(%arg0: i32, %arg1: memref<2xi32, #tpu.memory_space<smem>>) -> (i32, i32, i32) {
    %c0_i32 = arith.constant 0 : i32
    %c0_i32_0 = arith.constant 0 : i32
    %c0_i32_1 = arith.constant 0 : i32
    return %arg0, %c0_i32, %c0_i32_0 : i32, i32, i32
  }
  func.func @transform_2(%arg0: i32, %arg1: memref<2xi32, #tpu.memory_space<smem>>) -> (i32, i32) {
    %c0_i32 = arith.constant 0 : i32
    %c0_i32_0 = arith.constant 0 : i32
    %c0_i32_1 = arith.constant 0 : i32
    return %c0_i32, %c0_i32_0 : i32, i32
  }
  func.func @transform_3(%arg0: i32, %arg1: memref<2xi32, #tpu.memory_space<smem>>) -> (i32, i32, i32) {
    %c0_i32 = arith.constant 0 : i32
    %c0_i32_0 = arith.constant 0 : i32
    %c0_i32_1 = arith.constant 0 : i32
    return %arg0, %c0_i32, %c0_i32_0 : i32, i32, i32
  }
}

</mosaic_0001>

<llo_original>
// kernel: classification_forward.1
$region0: #{classification_forward.1}
  #allocation0 [shape = 'u32[]', space=smem, size = 0x4, offset = 0x4, fixed_abs, tag = 'smem constant byte address 0x4 - core index']
  #allocation1 [shape = 'u32[72,128]{1,0:T(1,128)}', space=vmem, size = 0x9000, scoped, tag = 'internal scratch']
  #allocation2 [shape = 's32[1]{0}', space=sflag, size = 0x4, scoped, tag = 'scoped memory for classification_forward.1']
  #allocation3 [shape = 'u8[512]{0}', space=smem, size = 0x200, scoped, tag = 'prefetched SMEM operand 0']
  %s0 = inlined_call_operand.vmem [shape: s32[2], index: 0, kind: input, shape index: {}]
  %s1 = inlined_call_operand.vmem [shape: bf16[2,128,32], index: 1, kind: input, shape index: {}]
  %s2 = inlined_call_operand.vmem [shape: bf16[2,128,128], index: 2, kind: input, shape index: {}]
  %s3 = inlined_call_operand.vmem [shape: f32[40,128], index: 3, kind: input, shape index: {}]
  %s4 = inlined_call_operand.vmem [shape: f32[2,1,8], index: 4, kind: output, shape index: {}]
  %s5 = sld [smem:[#allocation0]]
  $region45: #{classification_forward.1} parent=0
    _
  %s7 = ssub.s32 1, %s5
  %s8 = scalar_select 0, %s7, %s5
  %s10 = sshll.u32 %s0, 4
  %s11 = int_to_ptr.vmem [resolvable:$true] %s10
  %13 = dma.vmem_to_smem %s11, 16, [#allocation3], [#allocation2]
  %15 = dma.done [#allocation2], 16
  %16 = sfence
  loop: start=0, step=1, limit=4
  $region2: #{classification_forward.1} parent=0 // loop_pre_header
    _
  $region3: #{classification_forward.1} parent=0 // loop_header
    %s18 = sphi 0, %s22
    %p19 = scmp.ge.s32.totalorder %s18, 4
    %s28 = sphi 0, %s30
    %s31 = sphi 0, %s28
    %s32 = sphi 0, %s31
    %s48 = sphi 0, %s32
    %s54 = sphi 0, %s56
    %s57 = sphi 0, %s54
    %s58 = sphi 0, %s57
    %s74 = sphi 0, %s58
    %s78 = sphi 0, %s78
    %s80 = sphi 0, %s78
    %s81 = sphi 0, %s80
    %s95 = sphi 0, %s81
    %s101 = sphi 0, %s103
    %s104 = sphi 0, %s101
    %s105 = sphi 0, %s104
    %s121 = sphi 0, %s105
  $region4: #{classification_forward.1} parent=0 // loop_header_branch
    %21 = sbr.rel (%p19) target = $region8
  $region5: #{classification_forward.1} parent=0 // loop_body
    %s23 = ssub.s32 %s18, 1
    %s24 = ssub.s32 %s18, 2
    %s25 = sadd.s32 %s18, 1
    %s26 = ssub.s32 %s18, %s25
    %p27 = scmp.eq.s32.totalorder %s26, 0
    %s29 = sadd.s32 %s28, 1
    %s30 = scalar_select %p27, %s28, %s29
    %p33 = pneg %p27
    %p34 = scmp.eq.s32.totalorder %s18, 1
    %p35 = por %p33, %p34
    %p36 = scmp.ne.s32.totalorder %s28, %s31
    %p37 = scmp.eq.s32.totalorder %s18, 0
    %p38 = por %p36, %p37
    %p39 = scmp.ne.s32.totalorder %s28, %s31
    %p40 = scmp.eq.s32.totalorder %s23, 1
    %p41 = por %p39, %p40
    %p42 = scmp.ne.s32.totalorder %s31, %s32
    %p43 = scmp.eq.s32.totalorder %s23, 0
    %p44 = por %p42, %p43
    %p45 = scmp.ne.s32.totalorder %s31, %s32
    %p46 = scmp.eq.s32.totalorder %s24, 1
    %p47 = por %p45, %p46
    %p49 = scmp.ne.s32.totalorder %s32, %s48
    %p50 = scmp.eq.s32.totalorder %s24, 0
    %p51 = por %p49, %p50
    %s52 = ssub.s32 %s18, %s25
    %p53 = scmp.eq.s32.totalorder %s52, 0
    %s55 = sadd.s32 %s54, 1
    %s56 = scalar_select %p53, %s54, %s55
    %p59 = pneg %p53
    %p60 = scmp.eq.s32.totalorder %s18, 1
    %p61 = por %p59, %p60
    %p62 = scmp.ne.s32.totalorder %s54, %s57
    %p63 = scmp.eq.s32.totalorder %s18, 0
    %p64 = por %p62, %p63
    %p65 = scmp.ne.s32.totalorder %s54, %s57
    %p66 = scmp.eq.s32.totalorder %s23, 1
    %p67 = por %p65, %p66
    %p68 = scmp.ne.s32.totalorder %s57, %s58
    %p69 = scmp.eq.s32.totalorder %s23, 0
    %p70 = por %p68, %p69
    %p71 = scmp.ne.s32.totalorder %s57, %s58
    %p72 = scmp.eq.s32.totalorder %s24, 1
    %p73 = por %p71, %p72
    %p75 = scmp.ne.s32.totalorder %s58, %s74
    %p76 = scmp.eq.s32.totalorder %s24, 0
    %p77 = por %p75, %p76
    %s79 = sadd.s32 %s78, 1
    %p82 = scmp.eq.s32.totalorder %s18, 1
    %p83 = scmp.ne.s32.totalorder %s78, %s80
    %p84 = scmp.eq.s32.totalorder %s18, 0
    %p85 = por %p83, %p84
    %p86 = scmp.ne.s32.totalorder %s78, %s80
    %p87 = scmp.eq.s32.totalorder %s23, 1
    %p88 = por %p86, %p87
    %p89 = scmp.ne.s32.totalorder %s80, %s81
    %p90 = scmp.eq.s32.totalorder %s23, 0
    %p91 = por %p89, %p90
    %p92 = scmp.ne.s32.totalorder %s80, %s81
    %p93 = scmp.eq.s32.totalorder %s24, 1
    %p94 = por %p92, %p93
    %p96 = scmp.ne.s32.totalorder %s81, %s95
    %p97 = scmp.eq.s32.totalorder %s24, 0
    %p98 = por %p96, %p97
    %s99 = ssub.s32 %s18, %s25
    %p100 = scmp.eq.s32.totalorder %s99, 0
    %s102 = sadd.s32 %s101, 1
    %s103 = scalar_select %p100, %s101, %s102
    %p106 = pneg %p100
    %p107 = scmp.eq.s32.totalorder %s18, 1
    %p108 = por %p106, %p107
    %p109 = scmp.ne.s32.totalorder %s101, %s104
    %p110 = scmp.eq.s32.totalorder %s18, 0
    %p111 = por %p109, %p110
    %p112 = scmp.ne.s32.totalorder %s101, %s104
    %p113 = scmp.eq.s32.totalorder %s23, 1
    %p114 = por %p112, %p113
    %p115 = scmp.ne.s32.totalorder %s104, %s105
    %p116 = scmp.eq.s32.totalorder %s23, 0
    %p117 = por %p115, %p116
    %p118 = scmp.ne.s32.totalorder %s104, %s105
    %p119 = scmp.eq.s32.totalorder %s24, 1
    %p120 = por %p118, %p119
    %p122 = scmp.ne.s32.totalorder %s105, %s121
    %p123 = scmp.eq.s32.totalorder %s24, 0
    %p124 = por %p122, %p123
    %p125 = scmp.le.s32.totalorder 1, %s18
    %p126 = scmp.lt.s32.totalorder %s18, 3
    %p127 = pnand %p125, %p126
    %p128 = pneg %p127
    // Predicated region
    $region9: #{classification_forward.1} parent=5 // pred_check
      _
    $region10: #{classification_forward.1} parent=5 // pred_check_branch
      %130 = sbr.rel (%p127) target = $region12
    $region11: #{classification_forward.1} parent=5 // pred_region
      %s131 = ssub.s32 %s18, 1
      // Predicated region
      $region13: #{classification_forward.1} parent=11 // pred_check
        %p132 = pneg %p91
      $region14: #{classification_forward.1} parent=11 // pred_check_branch
        %134 = sbr.rel (%p132) target = $region16
      $region15: #{classification_forward.1} parent=11 // pred_region
        _
      $region16: #{classification_forward.1} parent=11 // pred_fallthru
        _
    $region12: #{classification_forward.1} parent=5 // pred_fallthru
      _
    %p135 = scmp.lt.s32.totalorder %s18, 2
    // Predicated region
    $region17: #{classification_forward.1} parent=5 // pred_check
      %p136 = pneg %p135
    $region18: #{classification_forward.1} parent=5 // pred_check_branch
      %138 = sbr.rel (%p136) target = $region20
    $region19: #{classification_forward.1} parent=5 // pred_region
      // Predicated region
      $region21: #{classification_forward.1} parent=19 // pred_check
        %p139 = pneg %p38
      $region22: #{classification_forward.1} parent=19 // pred_check_branch
        %141 = sbr.rel (%p139) target = $region24
      $region23: #{classification_forward.1} parent=19 // pred_region
        %p142 = scmp.lt.s32.totalorder %s18, 1
        %s143 = scalar_select %p142, %s18, 1
        %s144 = smul.addr %s143, 16
        %s145 = smul.addr %s144, 4
        %s146 = scalar_lea.vmem %s1, %s145
      $region24: #{classification_forward.1} parent=19 // pred_fallthru
        _
      // Predicated region
      $region25: #{classification_forward.1} parent=19 // pred_check
        %p147 = pneg %p64
      $region26: #{classification_forward.1} parent=19 // pred_check_branch
        %149 = sbr.rel (%p147) target = $region28
      $region27: #{classification_forward.1} parent=19 // pred_region
        %p150 = scmp.lt.s32.totalorder %s18, 1
        %s151 = scalar_select %p150, %s18, 1
        %s152 = smul.addr %s151, 16
        %s153 = smul.addr %s152, 4
        %s154 = scalar_lea.vmem %s2, %s153
      $region28: #{classification_forward.1} parent=19 // pred_fallthru
        _
    $region20: #{classification_forward.1} parent=5 // pred_fallthru
      _
    %p155 = scmp.le.s32.totalorder 1, %s18
    %p156 = scmp.lt.s32.totalorder %s18, 3
    %p157 = pnand %p155, %p156
    %p158 = pneg %p157
    // Predicated region
    $region29: #{classification_forward.1} parent=5 // pred_check
      _
    $region30: #{classification_forward.1} parent=5 // pred_check_branch
      %160 = sbr.rel (%p157) target = $region32
    $region31: #{classification_forward.1} parent=5 // pred_region
      %s161 = ssub.s32 %s18, 1
      %p162 = scmp.lt.s32.totalorder %s23, 1
      %s163 = scalar_select %p162, %s23, 1
      %s164 = smul.addr %s163, 16
      %s165 = smul.addr %s164, 4
      %s166 = scalar_lea.vmem %s1, %s165
      %p167 = pneg %p44
      %p168 = pneg %p41
      %p169 = scmp.lt.s32.totalorder %s23, 1
      %s170 = scalar_select %p169, %s23, 1
      %s171 = smul.addr %s170, 16
      %s172 = smul.addr %s171, 4
      %s173 = scalar_lea.vmem %s2, %s172
      %p174 = pneg %p70
      %p175 = pneg %p67
      %p176 = pneg %p91
      %p177 = pneg %p88
      %p178 = pneg %p117
      %p179 = pneg %p114
      %p180 = scmp.lt.s32.totalorder %s23, 1
      %s181 = scalar_select %p180, %s23, 1
      %s182 = scalar_lea.vmem %s4, %s181
      %p183 = scmp.lt.s32.totalorder %s23, 1
      %s184 = scalar_select %p183, %s23, 1
      %s185 = smul.addr %s184, 16
      %s186 = smul.addr %s185, 4
      %s187 = scalar_lea.vmem %s1, %s186
      %p188 = scmp.lt.s32.totalorder %s23, 1
      %s189 = scalar_select %p188, %s23, 1
      %s190 = smul.addr %s189, 16
      %s191 = smul.addr %s190, 4
      %s192 = scalar_lea.vmem %s2, %s191
      %p193 = scmp.lt.s32.totalorder %s23, 1
      %s194 = scalar_select %p193, %s23, 1
      %s195 = scalar_lea.vmem %s4, %s194
      %v197 = vld [vmem:[%s3] sm:$0xff]
      %v198 = vld [vmem:[%s3 + $0x8] sm:$0xff]
      %v199 = vld [vmem:[%s3 + $0x10] sm:$0xff]
      %v200 = vld [vmem:[%s3 + $0x18] sm:$0xff]
      %v201 = vld [vmem:[%s3 + $0x20] sm:$0x1]
      %v202 = vld [vmem:[%s3 + $0x21] sm:$0x1]
      %v203 = vld [vmem:[%s3 + $0x22] sm:$0x1]
      %v204 = vld [vmem:[%s3 + $0x23] sm:$0x1]
      %v205 = vld [vmem:[%s3 + $0x24] sm:$0x1]
      %v206 = vld [vmem:[%s3 + $0x25] sm:$0x1]
      %v207 = vlaneseq
      %v208 = vshrl.u32 %v207, 7
      %v209 = vadd.s32 %v208, 8
      %v210 = vadd.s32 %v208, 16
      %v211 = vadd.s32 %v208, 24
      %v212 = vadd.s32 %v208, 32
      %v213 = vadd.s32 %v208, 40
      %v214 = vadd.s32 %v208, 48
      %v215 = vadd.s32 %v208, 56
      %v216 = vadd.s32 %v208, 64
      %v217 = vadd.s32 %v208, 72
      %v218 = vadd.s32 %v208, 80
      %v219 = vadd.s32 %v208, 88
      %v220 = vadd.s32 %v208, 96
      %v221 = vadd.s32 %v208, 104
      %v222 = vadd.s32 %v208, 112
      %v223 = vadd.s32 %v208, 120
      %vm224 = vcmask 57344
      %225 = vst.msk [vmem:[%s195] sm:$0x1] %vm224, 0.0
      %s226 = sld [smem:[#allocation3 + %s23]]
      %v227 = vstv %s226
      %vm228 = vcmp.lt.s32.totalorder %v208, %v227
      %vm229 = vcmp.lt.s32.totalorder %v209, %v227
      %vm230 = vcmp.lt.s32.totalorder %v210, %v227
      %vm231 = vcmp.lt.s32.totalorder %v211, %v227
      %vm232 = vcmp.lt.s32.totalorder %v212, %v227
      %vm233 = vcmp.lt.s32.totalorder %v213, %v227
      %vm234 = vcmp.lt.s32.totalorder %v214, %v227
      %vm235 = vcmp.lt.s32.totalorder %v215, %v227
      %vm236 = vcmp.lt.s32.totalorder %v216, %v227
      %vm237 = vcmp.lt.s32.totalorder %v217, %v227
      %vm238 = vcmp.lt.s32.totalorder %v218, %v227
      %vm239 = vcmp.lt.s32.totalorder %v219, %v227
      %vm240 = vcmp.lt.s32.totalorder %v220, %v227
      %vm241 = vcmp.lt.s32.totalorder %v221, %v227
      %vm242 = vcmp.lt.s32.totalorder %v222, %v227
      %vm243 = vcmp.lt.s32.totalorder %v223, %v227
      %v244 = vsel %vm228, 1, 0
      %v245 = vsel %vm229, 1, 0
      %v246 = vsel %vm230, 1, 0
      %v247 = vsel %vm231, 1, 0
      %v248 = vsel %vm232, 1, 0
      %v249 = vsel %vm233, 1, 0
      %v250 = vsel %vm234, 1, 0
      %v251 = vsel %vm235, 1, 0
      %v252 = vsel %vm236, 1, 0
      %v253 = vsel %vm237, 1, 0
      %v254 = vsel %vm238, 1, 0
      %v255 = vsel %vm239, 1, 0
      %v256 = vsel %vm240, 1, 0
      %v257 = vsel %vm241, 1, 0
      %v258 = vsel %vm242, 1, 0
      %v259 = vsel %vm243, 1, 0
      %v260 = vcvt.s32.f32 %v244
      %v261 = vcvt.s32.f32 %v245
      %v262 = vcvt.s32.f32 %v246
      %v263 = vcvt.s32.f32 %v247
      %v264 = vcvt.s32.f32 %v248
      %v265 = vcvt.s32.f32 %v249
      %v266 = vcvt.s32.f32 %v250
      %v267 = vcvt.s32.f32 %v251
      %v268 = vcvt.s32.f32 %v252
      %v269 = vcvt.s32.f32 %v253
      %v270 = vcvt.s32.f32 %v254
      %v271 = vcvt.s32.f32 %v255
      %v272 = vcvt.s32.f32 %v256
      %v273 = vcvt.s32.f32 %v257
      %v274 = vcvt.s32.f32 %v258
      %v275 = vcvt.s32.f32 %v259
      %v276 = vld [vmem:[%s192] sm:$0xf]
      %v277 = vld [vmem:[%s192 + $0x4] sm:$0xf]
      %v278 = vld [vmem:[%s192 + $0x8] sm:$0xf]
      %v279 = vld [vmem:[%s192 + $0xc] sm:$0xf]
      %v280 = vld [vmem:[%s192 + $0x10] sm:$0xf]
      %v281 = vld [vmem:[%s192 + $0x14] sm:$0xf]
      %v282 = vld [vmem:[%s192 + $0x18] sm:$0xf]
      %v283 = vld [vmem:[%s192 + $0x1c] sm:$0xf]
      %v284 = vld [vmem:[%s192 + $0x20] sm:$0xf]
      %v285 = vld [vmem:[%s192 + $0x24] sm:$0xf]
      %v286 = vld [vmem:[%s192 + $0x28] sm:$0xf]
      %v287 = vld [vmem:[%s192 + $0x2c] sm:$0xf]
      %v288 = vld [vmem:[%s192 + $0x30] sm:$0xf]
      %v289 = vld [vmem:[%s192 + $0x34] sm:$0xf]
      %v290 = vld [vmem:[%s192 + $0x38] sm:$0xf]
      %v291 = vld [vmem:[%s192 + $0x3c] sm:$0xf]
      %v292 = vld [vmem:[%s187] sm:$0xf]
      %v293 = vld [vmem:[%s187 + $0x4] sm:$0xf]
      %v294 = vld [vmem:[%s187 + $0x8] sm:$0xf]
      %v295 = vld [vmem:[%s187 + $0xc] sm:$0xf]
      %v296 = vld [vmem:[%s187 + $0x10] sm:$0xf]
      %v297 = vld [vmem:[%s187 + $0x14] sm:$0xf]
      %v298 = vld [vmem:[%s187 + $0x18] sm:$0xf]
      %v299 = vld [vmem:[%s187 + $0x1c] sm:$0xf]
      %v300 = vld [vmem:[%s187 + $0x20] sm:$0xf]
      %v301 = vld [vmem:[%s187 + $0x24] sm:$0xf]
      %v302 = vld [vmem:[%s187 + $0x28] sm:$0xf]
      %v303 = vld [vmem:[%s187 + $0x2c] sm:$0xf]
      %v304 = vld [vmem:[%s187 + $0x30] sm:$0xf]
      %v305 = vld [vmem:[%s187 + $0x34] sm:$0xf]
      %v306 = vld [vmem:[%s187 + $0x38] sm:$0xf]
      %v307 = vld [vmem:[%s187 + $0x3c] sm:$0xf]
      %v308 = vunpack.c.l.bf16 %v292
      %v309 = vunpack.c.l.bf16 %v293
      %v310 = vunpack.c.l.bf16 %v294
      %v311 = vunpack.c.l.bf16 %v295
      %v312 = vunpack.c.l.bf16 %v296
      %v313 = vunpack.c.l.bf16 %v297
      %v314 = vunpack.c.l.bf16 %v298
      %v315 = vunpack.c.l.bf16 %v299
      %v316 = vunpack.c.l.bf16 %v300
      %v317 = vunpack.c.l.bf16 %v301
      %v318 = vunpack.c.l.bf16 %v302
      %v319 = vunpack.c.l.bf16 %v303
      %v320 = vunpack.c.l.bf16 %v304
      %v321 = vunpack.c.l.bf16 %v305
      %v322 = vunpack.c.l.bf16 %v306
      %v323 = vunpack.c.l.bf16 %v307
      %v340 = vunpack.c.l.b16 %v276
      %v341 = vunpack.c.l.b16 %v277
      %v342 = vunpack.c.l.b16 %v278
      %v343 = vunpack.c.l.b16 %v279
      %v344 = vunpack.c.l.b16 %v280
      %v345 = vunpack.c.l.b16 %v281
      %v346 = vunpack.c.l.b16 %v282
      %v347 = vunpack.c.l.b16 %v283
      %v348 = vunpack.c.l.b16 %v284
      %v349 = vunpack.c.l.b16 %v285
      %v350 = vunpack.c.l.b16 %v286
      %v351 = vunpack.c.l.b16 %v287
      %v352 = vunpack.c.l.b16 %v288
      %v353 = vunpack.c.l.b16 %v289
      %v354 = vunpack.c.l.b16 %v290
      %v355 = vunpack.c.l.b16 %v291
      %v356 = vpack.c.b16 %v341, %v340
      %v357 = vpack.c.b16 %v343, %v342
      %v358 = vpack.c.b16 %v345, %v344
      %v359 = vpack.c.b16 %v347, %v346
      %v360 = vpack.c.b16 %v349, %v348
      %v361 = vpack.c.b16 %v351, %v350
      %v362 = vpack.c.b16 %v353, %v352
      %v363 = vpack.c.b16 %v355, %v354
      %v388 = vunpack.c.l.b16 %v292
      %v389 = vunpack.c.l.b16 %v293
      %v390 = vunpack.c.l.b16 %v294
      %v391 = vunpack.c.l.b16 %v295
      %v392 = vunpack.c.l.b16 %v296
      %v393 = vunpack.c.l.b16 %v297
      %v394 = vunpack.c.l.b16 %v298
      %v395 = vunpack.c.l.b16 %v299
      %v396 = vunpack.c.l.b16 %v300
      %v397 = vunpack.c.l.b16 %v301
      %v398 = vunpack.c.l.b16 %v302
      %v399 = vunpack.c.l.b16 %v303
      %v400 = vunpack.c.l.b16 %v304
      %v401 = vunpack.c.l.b16 %v305
      %v402 = vunpack.c.l.b16 %v306
      %v403 = vunpack.c.l.b16 %v307
      %v404 = vpack.c.b16 %v389, %v388
      %v405 = vpack.c.b16 %v391, %v390
      %v406 = vpack.c.b16 %v393, %v392
      %v407 = vpack.c.b16 %v395, %v394
      %v408 = vpack.c.b16 %v397, %v396
      %v409 = vpack.c.b16 %v399, %v398
      %v410 = vpack.c.b16 %v401, %v400
      %v411 = vpack.c.b16 %v403, %v402
      %420 = vmatpush.bf16.msra.mxu0 %v411
      %421 = vmatpush.bf16.msra.mxu0 %v410
      %422 = vmatpush.bf16.msra.mxu0 %v409
      %423 = vmatpush.bf16.msra.mxu0 %v408
      %424 = vmatpush.bf16.msra.mxu0 %v407
      %425 = vmatpush.bf16.msra.mxu0 %v406
      %426 = vmatpush.bf16.msra.mxu0 %v405
      %427 = vmatpush.bf16.msra.mxu0 %v404
      %428 = vmatmul.bf16.gmra.mxu0 %v356
      %v429 = vpop.f32.mrf.mxu0
      %v430 = vadd.f32 %v308, %v429
      %v431 = vpop.f32.mrf.mxu0
      %v432 = vadd.f32 %v309, %v431
      %433 = vmatmul.bf16.gmra.mxu0 %v357
      %v434 = vpop.f32.mrf.mxu0
      %v435 = vadd.f32 %v310, %v434
      %v436 = vpop.f32.mrf.mxu0
      %v437 = vadd.f32 %v311, %v436
      %438 = vmatmul.bf16.gmra.mxu0 %v358
      %v439 = vpop.f32.mrf.mxu0
      %v440 = vadd.f32 %v312, %v439
      %v441 = vpop.f32.mrf.mxu0
      %v442 = vadd.f32 %v313, %v441
      %443 = vmatmul.bf16.gmra.mxu0 %v359
      %v444 = vpop.f32.mrf.mxu0
      %v445 = vadd.f32 %v314, %v444
      %v446 = vpop.f32.mrf.mxu0
      %v447 = vadd.f32 %v315, %v446
      %448 = vmatmul.bf16.gmra.mxu0 %v360
      %v449 = vpop.f32.mrf.mxu0
      %v450 = vadd.f32 %v316, %v449
      %v451 = vpop.f32.mrf.mxu0
      %v452 = vadd.f32 %v317, %v451
      %453 = vmatmul.bf16.gmra.mxu0 %v361
      %v454 = vpop.f32.mrf.mxu0
      %v455 = vadd.f32 %v318, %v454
      %v456 = vpop.f32.mrf.mxu0
      %v457 = vadd.f32 %v319, %v456
      %458 = vmatmul.bf16.gmra.mxu0 %v362
      %v459 = vpop.f32.mrf.mxu0
      %v460 = vadd.f32 %v320, %v459
      %v461 = vpop.f32.mrf.mxu0
      %v462 = vadd.f32 %v321, %v461
      %463 = vmatmul.bf16.gmra.mxu0 %v363
      %v464 = vpop.f32.mrf.mxu0
      %v465 = vadd.f32 %v322, %v464
      %v466 = vpop.f32.mrf.mxu0
      %v467 = vadd.f32 %v323, %v466
      %468 = vdwg.mxu0
      %v469 = vperm.slane %v201, 0
      %v470 = vadd.f32 %v430, %v469
      %v471 = vadd.f32 %v432, %v469
      %v472 = vadd.f32 %v435, %v469
      %v473 = vadd.f32 %v437, %v469
      %v474 = vadd.f32 %v440, %v469
      %v475 = vadd.f32 %v442, %v469
      %v476 = vadd.f32 %v445, %v469
      %v477 = vadd.f32 %v447, %v469
      %v478 = vadd.f32 %v450, %v469
      %v479 = vadd.f32 %v452, %v469
      %v480 = vadd.f32 %v455, %v469
      %v481 = vadd.f32 %v457, %v469
      %v482 = vadd.f32 %v460, %v469
      %v483 = vadd.f32 %v462, %v469
      %v484 = vadd.f32 %v465, %v469
      %v485 = vadd.f32 %v467, %v469
      %v486 = vmax.f32 %v470, 0.0
      %v487 = vmax.f32 %v471, 0.0
      %v488 = vmax.f32 %v472, 0.0
      %v489 = vmax.f32 %v473, 0.0
      %v490 = vmax.f32 %v474, 0.0
      %v491 = vmax.f32 %v475, 0.0
      %v492 = vmax.f32 %v476, 0.0
      %v493 = vmax.f32 %v477, 0.0
      %v494 = vmax.f32 %v478, 0.0
      %v495 = vmax.f32 %v479, 0.0
      %v496 = vmax.f32 %v480, 0.0
      %v497 = vmax.f32 %v481, 0.0
      %v498 = vmax.f32 %v482, 0.0
      %v499 = vmax.f32 %v483, 0.0
      %v500 = vmax.f32 %v484, 0.0
      %v501 = vmax.f32 %v485, 0.0
      %v502 = vmul.f32 %v486, %v260
      %v503 = vmul.f32 %v487, %v261
      %v504 = vmul.f32 %v488, %v262
      %v505 = vmul.f32 %v489, %v263
      %v506 = vmul.f32 %v490, %v264
      %v507 = vmul.f32 %v491, %v265
      %v508 = vmul.f32 %v492, %v266
      %v509 = vmul.f32 %v493, %v267
      %v510 = vmul.f32 %v494, %v268
      %v511 = vmul.f32 %v495, %v269
      %v512 = vmul.f32 %v496, %v270
      %v513 = vmul.f32 %v497, %v271
      %v514 = vmul.f32 %v498, %v272
      %v515 = vmul.f32 %v499, %v273
      %v516 = vmul.f32 %v500, %v274
      %v517 = vmul.f32 %v501, %v275
      %v518 = vpack.c.bf16 %v503, %v502
      %v519 = vpack.c.bf16 %v505, %v504
      %v520 = vpack.c.bf16 %v507, %v506
      %v521 = vpack.c.bf16 %v509, %v508
      %v522 = vpack.c.bf16 %v511, %v510
      %v523 = vpack.c.bf16 %v513, %v512
      %v524 = vpack.c.bf16 %v515, %v514
      %v525 = vpack.c.bf16 %v517, %v516
      %v526 = vpack.c.bf16 %v198, %v197
      %v527 = vpack.c.bf16 %v200, %v199
      %v528 = vperm.slane %v204, 0
      %531 = vrot.lane.b32.xlu0 %v526, 64
      %v532 = vpop.permute.xlu0 %531
      %533 = vrot.lane.b32.xlu0 %v527, 64
      %v534 = vpop.permute.xlu0 %533
      %vm537 = vcmask 261120
      %v539 = vsel %vm537, %v518, 0
      %v542 = vsel %vm537, %v519, 0
      %v545 = vsel %vm537, %v520, 0
      %v548 = vsel %vm537, %v521, 0
      %v551 = vsel %vm537, %v522, 0
      %v554 = vsel %vm537, %v523, 0
      %v557 = vsel %vm537, %v524, 0
      %v560 = vsel %vm537, %v525, 0
      %562 = vmatpush.bf16.msra.mxu0 0
      %563 = vmatpush.bf16.msra.mxu0 0
      %564 = vmatpush.bf16.msra.mxu0 0
      %565 = vmatpush.bf16.msra.mxu0 0
      %566 = vmatpush.bf16.msra.mxu0 0
      %567 = vmatpush.bf16.msra.mxu0 0
      %568 = vmatpush.bf16.msra.mxu0 %v534
      %569 = vmatpush.bf16.msra.mxu0 %v532
      %570 = vmatmul.bf16.gmra.mxu0 %v539
      %v571 = vpop.f32.mrf.mxu0
      %v572 = vadd.f32 %v528, %v571
      %v573 = vpop.f32.mrf.mxu0
      %v574 = vadd.f32 %v528, %v573
      %575 = vmatmul.bf16.gmra.mxu0 %v542
      %v576 = vpop.f32.mrf.mxu0
      %v577 = vadd.f32 %v528, %v576
      %v578 = vpop.f32.mrf.mxu0
      %v579 = vadd.f32 %v528, %v578
      %580 = vmatmul.bf16.gmra.mxu0 %v545
      %v581 = vpop.f32.mrf.mxu0
      %v582 = vadd.f32 %v528, %v581
      %v583 = vpop.f32.mrf.mxu0
      %v584 = vadd.f32 %v528, %v583
      %585 = vmatmul.bf16.gmra.mxu0 %v548
      %v586 = vpop.f32.mrf.mxu0
      %v587 = vadd.f32 %v528, %v586
      %v588 = vpop.f32.mrf.mxu0
      %v589 = vadd.f32 %v528, %v588
      %590 = vmatmul.bf16.gmra.mxu0 %v551
      %v591 = vpop.f32.mrf.mxu0
      %v592 = vadd.f32 %v528, %v591
      %v593 = vpop.f32.mrf.mxu0
      %v594 = vadd.f32 %v528, %v593
      %595 = vmatmul.bf16.gmra.mxu0 %v554
      %v596 = vpop.f32.mrf.mxu0
      %v597 = vadd.f32 %v528, %v596
      %v598 = vpop.f32.mrf.mxu0
      %v599 = vadd.f32 %v528, %v598
      %600 = vmatmul.bf16.gmra.mxu0 %v557
      %v601 = vpop.f32.mrf.mxu0
      %v602 = vadd.f32 %v528, %v601
      %v603 = vpop.f32.mrf.mxu0
      %v604 = vadd.f32 %v528, %v603
      %605 = vmatmul.bf16.gmra.mxu0 %v560
      %v606 = vpop.f32.mrf.mxu0
      %v607 = vadd.f32 %v528, %v606
      %v608 = vpop.f32.mrf.mxu0
      %v609 = vadd.f32 %v528, %v608
      %610 = vdwg.mxu0
      %vm611 = vcmask 64512
      %v612 = vsel %vm611, %v572, -inf
      %613 = vmax.xlane.f32.xlu0 %v612
      %v614 = vpop.xlane.xlu0 %613
      %v615 = vsel %vm611, %v574, -inf
      %616 = vmax.xlane.f32.xlu0 %v615
      %v617 = vpop.xlane.xlu0 %616
      %v618 = vsel %vm611, %v577, -inf
      %619 = vmax.xlane.f32.xlu0 %v618
      %v620 = vpop.xlane.xlu0 %619
      %v621 = vsel %vm611, %v579, -inf
      %622 = vmax.xlane.f32.xlu0 %v621
      %v623 = vpop.xlane.xlu0 %622
      %v624 = vsel %vm611, %v582, -inf
      %625 = vmax.xlane.f32.xlu0 %v624
      %v626 = vpop.xlane.xlu0 %625
      %v627 = vsel %vm611, %v584, -inf
      %628 = vmax.xlane.f32.xlu0 %v627
      %v629 = vpop.xlane.xlu0 %628
      %v630 = vsel %vm611, %v587, -inf
      %631 = vmax.xlane.f32.xlu0 %v630
      %v632 = vpop.xlane.xlu0 %631
      %v633 = vsel %vm611, %v589, -inf
      %634 = vmax.xlane.f32.xlu0 %v633
      %v635 = vpop.xlane.xlu0 %634
      %v636 = vsel %vm611, %v592, -inf
      %637 = vmax.xlane.f32.xlu0 %v636
      %v638 = vpop.xlane.xlu0 %637
      %v639 = vsel %vm611, %v594, -inf
      %640 = vmax.xlane.f32.xlu0 %v639
      %v641 = vpop.xlane.xlu0 %640
      %v642 = vsel %vm611, %v597, -inf
      %643 = vmax.xlane.f32.xlu0 %v642
      %v644 = vpop.xlane.xlu0 %643
      %v645 = vsel %vm611, %v599, -inf
      %646 = vmax.xlane.f32.xlu0 %v645
      %v647 = vpop.xlane.xlu0 %646
      %v648 = vsel %vm611, %v602, -inf
      %649 = vmax.xlane.f32.xlu0 %v648
      %v650 = vpop.xlane.xlu0 %649
      %v651 = vsel %vm611, %v604, -inf
      %652 = vmax.xlane.f32.xlu0 %v651
      %v653 = vpop.xlane.xlu0 %652
      %v654 = vsel %vm611, %v607, -inf
      %655 = vmax.xlane.f32.xlu0 %v654
      %v656 = vpop.xlane.xlu0 %655
      %v657 = vsel %vm611, %v609, -inf
      %658 = vmax.xlane.f32.xlu0 %v657
      %v659 = vpop.xlane.xlu0 %658
      %v660 = vsub.f32 %v572, %v614
      %v661 = vsub.f32 %v574, %v617
      %v662 = vsub.f32 %v577, %v620
      %v663 = vsub.f32 %v579, %v623
      %v664 = vsub.f32 %v582, %v626
      %v665 = vsub.f32 %v584, %v629
      %v666 = vsub.f32 %v587, %v632
      %v667 = vsub.f32 %v589, %v635
      %v668 = vsub.f32 %v592, %v638
      %v669 = vsub.f32 %v594, %v641
      %v670 = vsub.f32 %v597, %v644
      %v671 = vsub.f32 %v599, %v647
      %v672 = vsub.f32 %v602, %v650
      %v673 = vsub.f32 %v604, %v653
      %v674 = vsub.f32 %v607, %v656
      %v675 = vsub.f32 %v609, %v659
      %v676 = vmul.f32 %v660, 1.442695
      %v677 = vpow.pop %v676
      %v678 = vmul.f32 %v661, 1.442695
      %v679 = vpow.pop %v678
      %v680 = vmul.f32 %v662, 1.442695
      %v681 = vpow.pop %v680
      %v682 = vmul.f32 %v663, 1.442695
      %v683 = vpow.pop %v682
      %v684 = vmul.f32 %v664, 1.442695
      %v685 = vpow.pop %v684
      %v686 = vmul.f32 %v665, 1.442695
      %v687 = vpow.pop %v686
      %v688 = vmul.f32 %v666, 1.442695
      %v689 = vpow.pop %v688
      %v690 = vmul.f32 %v667, 1.442695
      %v691 = vpow.pop %v690
      %v692 = vmul.f32 %v668, 1.442695
      %v693 = vpow.pop %v692
      %v694 = vmul.f32 %v669, 1.442695
      %v695 = vpow.pop %v694
      %v696 = vmul.f32 %v670, 1.442695
      %v697 = vpow.pop %v696
      %v698 = vmul.f32 %v671, 1.442695
      %v699 = vpow.pop %v698
      %v700 = vmul.f32 %v672, 1.442695
      %v701 = vpow.pop %v700
      %v702 = vmul.f32 %v673, 1.442695
      %v703 = vpow.pop %v702
      %v704 = vmul.f32 %v674, 1.442695
      %v705 = vpow.pop %v704
      %v706 = vmul.f32 %v675, 1.442695
      %v707 = vpow.pop %v706
      %v708 = vsel %vm611, %v677, 0.0
      %709 = vadd.xlane.f32.xlu0 %v708
      %v710 = vpop.xlane.xlu0 %709
      %v711 = vsel %vm611, %v679, 0.0
      %712 = vadd.xlane.f32.xlu0 %v711
      %v713 = vpop.xlane.xlu0 %712
      %v714 = vsel %vm611, %v681, 0.0
      %715 = vadd.xlane.f32.xlu0 %v714
      %v716 = vpop.xlane.xlu0 %715
      %v717 = vsel %vm611, %v683, 0.0
      %718 = vadd.xlane.f32.xlu0 %v717
      %v719 = vpop.xlane.xlu0 %718
      %v720 = vsel %vm611, %v685, 0.0
      %721 = vadd.xlane.f32.xlu0 %v720
      %v722 = vpop.xlane.xlu0 %721
      %v723 = vsel %vm611, %v687, 0.0
      %724 = vadd.xlane.f32.xlu0 %v723
      %v725 = vpop.xlane.xlu0 %724
      %v726 = vsel %vm611, %v689, 0.0
      %727 = vadd.xlane.f32.xlu0 %v726
      %v728 = vpop.xlane.xlu0 %727
      %v729 = vsel %vm611, %v691, 0.0
      %730 = vadd.xlane.f32.xlu0 %v729
      %v731 = vpop.xlane.xlu0 %730
      %v732 = vsel %vm611, %v693, 0.0
      %733 = vadd.xlane.f32.xlu0 %v732
      %v734 = vpop.xlane.xlu0 %733
      %v735 = vsel %vm611, %v695, 0.0
      %736 = vadd.xlane.f32.xlu0 %v735
      %v737 = vpop.xlane.xlu0 %736
      %v738 = vsel %vm611, %v697, 0.0
      %739 = vadd.xlane.f32.xlu0 %v738
      %v740 = vpop.xlane.xlu0 %739
      %v741 = vsel %vm611, %v699, 0.0
      %742 = vadd.xlane.f32.xlu0 %v741
      %v743 = vpop.xlane.xlu0 %742
      %v744 = vsel %vm611, %v701, 0.0
      %745 = vadd.xlane.f32.xlu0 %v744
      %v746 = vpop.xlane.xlu0 %745
      %v747 = vsel %vm611, %v703, 0.0
      %748 = vadd.xlane.f32.xlu0 %v747
      %v749 = vpop.xlane.xlu0 %748
      %v750 = vsel %vm611, %v705, 0.0
      %751 = vadd.xlane.f32.xlu0 %v750
      %v752 = vpop.xlane.xlu0 %751
      %v753 = vsel %vm611, %v707, 0.0
      %754 = vadd.xlane.f32.xlu0 %v753
      %v755 = vpop.xlane.xlu0 %754
      %v756 = vrcp.pop %v710
      %v757 = vrcp.pop %v713
      %v758 = vrcp.pop %v716
      %v759 = vrcp.pop %v719
      %v760 = vrcp.pop %v722
      %v761 = vrcp.pop %v725
      %v762 = vrcp.pop %v728
      %v763 = vrcp.pop %v731
      %v764 = vrcp.pop %v734
      %v765 = vrcp.pop %v737
      %v766 = vrcp.pop %v740
      %v767 = vrcp.pop %v743
      %v768 = vrcp.pop %v746
      %v769 = vrcp.pop %v749
      %v770 = vrcp.pop %v752
      %v771 = vrcp.pop %v755
      %v772 = vmul.f32 %v677, %v756
      %v773 = vmul.f32 %v679, %v757
      %v774 = vmul.f32 %v681, %v758
      %v775 = vmul.f32 %v683, %v759
      %v776 = vmul.f32 %v685, %v760
      %v777 = vmul.f32 %v687, %v761
      %v778 = vmul.f32 %v689, %v762
      %v779 = vmul.f32 %v691, %v763
      %v780 = vmul.f32 %v693, %v764
      %v781 = vmul.f32 %v695, %v765
      %v782 = vmul.f32 %v697, %v766
      %v783 = vmul.f32 %v699, %v767
      %v784 = vmul.f32 %v701, %v768
      %v785 = vmul.f32 %v703, %v769
      %v786 = vmul.f32 %v705, %v770
      %v787 = vmul.f32 %v707, %v771
      %v788 = vmul.f32 %v772, %v260
      %v789 = vmul.f32 %v773, %v261
      %v790 = vmul.f32 %v774, %v262
      %v791 = vmul.f32 %v775, %v263
      %v792 = vmul.f32 %v776, %v264
      %v793 = vmul.f32 %v777, %v265
      %v794 = vmul.f32 %v778, %v266
      %v795 = vmul.f32 %v779, %v267
      %v796 = vmul.f32 %v780, %v268
      %v797 = vmul.f32 %v781, %v269
      %v798 = vmul.f32 %v782, %v270
      %v799 = vmul.f32 %v783, %v271
      %v800 = vmul.f32 %v784, %v272
      %v801 = vmul.f32 %v785, %v273
      %v802 = vmul.f32 %v786, %v274
      %v803 = vmul.f32 %v787, %v275
      %804 = vxpose.xlu0.b32.start [1/16] %v788, 128
      %805 = vxpose.xlu0.b32.cont [2/16] %v789, 128
      %806 = vxpose.xlu0.b32.cont [3/16] %v790, 128
      %807 = vxpose.xlu0.b32.cont [4/16] %v791, 128
      %808 = vxpose.xlu0.b32.cont [5/16] %v792, 128
      %809 = vxpose.xlu0.b32.cont [6/16] %v793, 128
      %810 = vxpose.xlu0.b32.cont [7/16] %v794, 128
      %811 = vxpose.xlu0.b32.cont [8/16] %v795, 128
      %812 = vxpose.xlu0.b32.cont [9/16] %v796, 128
      %813 = vxpose.xlu0.b32.cont [10/16] %v797, 128
      %814 = vxpose.xlu0.b32.cont [11/16] %v798, 128
      %815 = vxpose.xlu0.b32.cont [12/16] %v799, 128
      %816 = vxpose.xlu0.b32.cont [13/16] %v800, 128
      %817 = vxpose.xlu0.b32.cont [14/16] %v801, 128
      %818 = vxpose.xlu0.b32.cont [15/16] %v802, 128
      %819 = vxpose.xlu0.b32.end [16/16] %v803, 128
      %v820 = vpop.trf.xlu0
      %v821 = vpop.trf.xlu0
      %v822 = vpop.trf.xlu0
      %v823 = vpop.trf.xlu0
      %v824 = vpop.trf.xlu0
      %v825 = vpop.trf.xlu0
      %v826 = vpop.trf.xlu0
      %v827 = vpop.trf.xlu0
      %v828 = vpop.trf.xlu0
      %v829 = vpop.trf.xlu0
      %v830 = vpop.trf.xlu0
      %v831 = vpop.trf.xlu0
      %v832 = vpop.trf.xlu0
      %v833 = vpop.trf.xlu0
      %v834 = vpop.trf.xlu0
      %v835 = vpop.trf.xlu0
      %v836 = vpack.c.bf16 %v789, %v788
      %v837 = vpack.c.bf16 %v791, %v790
      %v838 = vpack.c.bf16 %v793, %v792
      %v839 = vpack.c.bf16 %v795, %v794
      %v840 = vpack.c.bf16 %v797, %v796
      %v841 = vpack.c.bf16 %v799, %v798
      %v842 = vpack.c.bf16 %v801, %v800
      %v843 = vpack.c.bf16 %v803, %v802
      %v844 = vpack.c.bf16 %v820, %v820
      %845 = vmatpush.bf16.msra.mxu0 %v525
      %846 = vmatpush.bf16.msra.mxu0 %v524
      %847 = vmatpush.bf16.msra.mxu0 %v523
      %848 = vmatpush.bf16.msra.mxu0 %v522
      %849 = vmatpush.bf16.msra.mxu0 %v521
      %850 = vmatpush.bf16.msra.mxu0 %v520
      %851 = vmatpush.bf16.msra.mxu0 %v519
      %852 = vmatpush.bf16.msra.mxu0 %v518
      %853 = vmatmul.bf16.gmra.mxu0 %v844
      %v854 = vpop.f32.mrf.mxu0
      %v855 = vadd.f32 0.0, %v854
      %v856 = vpop.f32.mrf.mxu0
      %857 = vdwg.mxu0
      %858 = vmatpush.bf16.msra.mxu0 %v363
      %859 = vmatpush.bf16.msra.mxu0 %v362
      %860 = vmatpush.bf16.msra.mxu0 %v361
      %861 = vmatpush.bf16.msra.mxu0 %v360
      %862 = vmatpush.bf16.msra.mxu0 %v359
      %863 = vmatpush.bf16.msra.mxu0 %v358
      %864 = vmatpush.bf16.msra.mxu0 %v357
      %865 = vmatpush.bf16.msra.mxu0 %v356
      %866 = vmatmul.bf16.gmra.mxu0 %v844
      %v867 = vpop.f32.mrf.mxu0
      %v868 = vadd.f32 0.0, %v867
      %v869 = vpop.f32.mrf.mxu0
      %870 = vdwg.mxu0
      %v871 = vpack.c.bf16 %v868, %v868
      %872 = vmatpush.bf16.msra.mxu0 %v843
      %873 = vmatpush.bf16.msra.mxu0 %v842
      %874 = vmatpush.bf16.msra.mxu0 %v841
      %875 = vmatpush.bf16.msra.mxu0 %v840
      %876 = vmatpush.bf16.msra.mxu0 %v839
      %877 = vmatpush.bf16.msra.mxu0 %v838
      %878 = vmatpush.bf16.msra.mxu0 %v837
      %879 = vmatpush.bf16.msra.mxu0 %v836
      %880 = vmatmul.bf16.gmra.mxu0 %v871
      %v881 = vpop.f32.mrf.mxu0
      %v882 = vadd.f32 0.0, %v881
      %v883 = vpop.f32.mrf.mxu0
      %884 = vdwg.mxu0
      %886 = vset.pattern.permute.xlu0 0
      %887 = vperm.xlu0 %886, %v788
      %v888 = vpop.permute.xlu0 %887
      %891 = vset.pattern.permute.xlu0 0
      %892 = vperm.xlu0 %891, %v789
      %v893 = vpop.permute.xlu0 %892
      %896 = vset.pattern.permute.xlu0 0
      %897 = vperm.xlu0 %896, %v790
      %v898 = vpop.permute.xlu0 %897
      %901 = vset.pattern.permute.xlu0 0
      %902 = vperm.xlu0 %901, %v791
      %v903 = vpop.permute.xlu0 %902
      %906 = vset.pattern.permute.xlu0 0
      %907 = vperm.xlu0 %906, %v792
      %v908 = vpop.permute.xlu0 %907
      %911 = vset.pattern.permute.xlu0 0
      %912 = vperm.xlu0 %911, %v793
      %v913 = vpop.permute.xlu0 %912
      %916 = vset.pattern.permute.xlu0 0
      %917 = vperm.xlu0 %916, %v794
      %v918 = vpop.permute.xlu0 %917
      %921 = vset.pattern.permute.xlu0 0
      %922 = vperm.xlu0 %921, %v795
      %v923 = vpop.permute.xlu0 %922
      %926 = vset.pattern.permute.xlu0 0
      %927 = vperm.xlu0 %926, %v796
      %v928 = vpop.permute.xlu0 %927
      %931 = vset.pattern.permute.xlu0 0
      %932 = vperm.xlu0 %931, %v797
      %v933 = vpop.permute.xlu0 %932
      %936 = vset.pattern.permute.xlu0 0
      %937 = vperm.xlu0 %936, %v798
      %v938 = vpop.permute.xlu0 %937
      %941 = vset.pattern.permute.xlu0 0
      %942 = vperm.xlu0 %941, %v799
      %v943 = vpop.permute.xlu0 %942
      %946 = vset.pattern.permute.xlu0 0
      %947 = vperm.xlu0 %946, %v800
      %v948 = vpop.permute.xlu0 %947
      %951 = vset.pattern.permute.xlu0 0
      %952 = vperm.xlu0 %951, %v801
      %v953 = vpop.permute.xlu0 %952
      %956 = vset.pattern.permute.xlu0 0
      %957 = vperm.xlu0 %956, %v802
      %v958 = vpop.permute.xlu0 %957
      %961 = vset.pattern.permute.xlu0 0
      %962 = vperm.xlu0 %961, %v803
      %v963 = vpop.permute.xlu0 %962
      %v965 = vperm.slane %v820, 0
      %v966 = vsub.f32 %v888, %v965
      %v967 = vsub.f32 %v893, %v965
      %v968 = vsub.f32 %v898, %v965
      %v969 = vsub.f32 %v903, %v965
      %v970 = vsub.f32 %v908, %v965
      %v971 = vsub.f32 %v913, %v965
      %v972 = vsub.f32 %v918, %v965
      %v973 = vsub.f32 %v923, %v965
      %v974 = vsub.f32 %v928, %v965
      %v975 = vsub.f32 %v933, %v965
      %v976 = vsub.f32 %v938, %v965
      %v977 = vsub.f32 %v943, %v965
      %v978 = vsub.f32 %v948, %v965
      %v979 = vsub.f32 %v953, %v965
      %v980 = vsub.f32 %v958, %v965
      %v981 = vsub.f32 %v963, %v965
      %v982 = vand.u32 2147483647, %v966
      %v983 = vand.u32 2147483647, %v967
      %v984 = vand.u32 2147483647, %v968
      %v985 = vand.u32 2147483647, %v969
      %v986 = vand.u32 2147483647, %v970
      %v987 = vand.u32 2147483647, %v971
      %v988 = vand.u32 2147483647, %v972
      %v989 = vand.u32 2147483647, %v973
      %v990 = vand.u32 2147483647, %v974
      %v991 = vand.u32 2147483647, %v975
      %v992 = vand.u32 2147483647, %v976
      %v993 = vand.u32 2147483647, %v977
      %v994 = vand.u32 2147483647, %v978
      %v995 = vand.u32 2147483647, %v979
      %v996 = vand.u32 2147483647, %v980
      %v997 = vand.u32 2147483647, %v981
      %998 = vset.pattern.permute.xlu0 1
      %999 = vperm.xlu0 %998, %v788
      %v1000 = vpop.permute.xlu0 %999
      %1002 = vset.pattern.permute.xlu0 1
      %1003 = vperm.xlu0 %1002, %v789
      %v1004 = vpop.permute.xlu0 %1003
      %1006 = vset.pattern.permute.xlu0 1
      %1007 = vperm.xlu0 %1006, %v790
      %v1008 = vpop.permute.xlu0 %1007
      %1010 = vset.pattern.permute.xlu0 1
      %1011 = vperm.xlu0 %1010, %v791
      %v1012 = vpop.permute.xlu0 %1011
      %1014 = vset.pattern.permute.xlu0 1
      %1015 = vperm.xlu0 %1014, %v792
      %v1016 = vpop.permute.xlu0 %1015
      %1018 = vset.pattern.permute.xlu0 1
      %1019 = vperm.xlu0 %1018, %v793
      %v1020 = vpop.permute.xlu0 %1019
      %1022 = vset.pattern.permute.xlu0 1
      %1023 = vperm.xlu0 %1022, %v794
      %v1024 = vpop.permute.xlu0 %1023
      %1026 = vset.pattern.permute.xlu0 1
      %1027 = vperm.xlu0 %1026, %v795
      %v1028 = vpop.permute.xlu0 %1027
      %1030 = vset.pattern.permute.xlu0 1
      %1031 = vperm.xlu0 %1030, %v796
      %v1032 = vpop.permute.xlu0 %1031
      %1034 = vset.pattern.permute.xlu0 1
      %1035 = vperm.xlu0 %1034, %v797
      %v1036 = vpop.permute.xlu0 %1035
      %1038 = vset.pattern.permute.xlu0 1
      %1039 = vperm.xlu0 %1038, %v798
      %v1040 = vpop.permute.xlu0 %1039
      %1042 = vset.pattern.permute.xlu0 1
      %1043 = vperm.xlu0 %1042, %v799
      %v1044 = vpop.permute.xlu0 %1043
      %1046 = vset.pattern.permute.xlu0 1
      %1047 = vperm.xlu0 %1046, %v800
      %v1048 = vpop.permute.xlu0 %1047
      %1050 = vset.pattern.permute.xlu0 1
      %1051 = vperm.xlu0 %1050, %v801
      %v1052 = vpop.permute.xlu0 %1051
      %1054 = vset.pattern.permute.xlu0 1
      %1055 = vperm.xlu0 %1054, %v802
      %v1056 = vpop.permute.xlu0 %1055
      %1058 = vset.pattern.permute.xlu0 1
      %1059 = vperm.xlu0 %1058, %v803
      %v1060 = vpop.permute.xlu0 %1059
      %v1062 = vperm.slane %v820, 1
      %v1063 = vsub.f32 %v1000, %v1062
      %v1064 = vsub.f32 %v1004, %v1062
      %v1065 = vsub.f32 %v1008, %v1062
      %v1066 = vsub.f32 %v1012, %v1062
      %v1067 = vsub.f32 %v1016, %v1062
      %v1068 = vsub.f32 %v1020, %v1062
      %v1069 = vsub.f32 %v1024, %v1062
      %v1070 = vsub.f32 %v1028, %v1062
      %v1071 = vsub.f32 %v1032, %v1062
      %v1072 = vsub.f32 %v1036, %v1062
      %v1073 = vsub.f32 %v1040, %v1062
      %v1074 = vsub.f32 %v1044, %v1062
      %v1075 = vsub.f32 %v1048, %v1062
      %v1076 = vsub.f32 %v1052, %v1062
      %v1077 = vsub.f32 %v1056, %v1062
      %v1078 = vsub.f32 %v1060, %v1062
      %v1079 = vand.u32 2147483647, %v1063
      %v1080 = vand.u32 2147483647, %v1064
      %v1081 = vand.u32 2147483647, %v1065
      %v1082 = vand.u32 2147483647, %v1066
      %v1083 = vand.u32 2147483647, %v1067
      %v1084 = vand.u32 2147483647, %v1068
      %v1085 = vand.u32 2147483647, %v1069
      %v1086 = vand.u32 2147483647, %v1070
      %v1087 = vand.u32 2147483647, %v1071
      %v1088 = vand.u32 2147483647, %v1072
      %v1089 = vand.u32 2147483647, %v1073
      %v1090 = vand.u32 2147483647, %v1074
      %v1091 = vand.u32 2147483647, %v1075
      %v1092 = vand.u32 2147483647, %v1076
      %v1093 = vand.u32 2147483647, %v1077
      %v1094 = vand.u32 2147483647, %v1078
      %v1095 = vadd.f32 %v982, %v1079
      %v1096 = vadd.f32 %v983, %v1080
      %v1097 = vadd.f32 %v984, %v1081
      %v1098 = vadd.f32 %v985, %v1082
      %v1099 = vadd.f32 %v986, %v1083
      %v1100 = vadd.f32 %v987, %v1084
      %v1101 = vadd.f32 %v988, %v1085
      %v1102 = vadd.f32 %v989, %v1086
      %v1103 = vadd.f32 %v990, %v1087
      %v1104 = vadd.f32 %v991, %v1088
      %v1105 = vadd.f32 %v992, %v1089
      %v1106 = vadd.f32 %v993, %v1090
      %v1107 = vadd.f32 %v994, %v1091
      %v1108 = vadd.f32 %v995, %v1092
      %v1109 = vadd.f32 %v996, %v1093
      %v1110 = vadd.f32 %v997, %v1094
      %1111 = vset.pattern.permute.xlu0 2
      %1112 = vperm.xlu0 %1111, %v788
      %v1113 = vpop.permute.xlu0 %1112
      %1115 = vset.pattern.permute.xlu0 2
      %1116 = vperm.xlu0 %1115, %v789
      %v1117 = vpop.permute.xlu0 %1116
      %1119 = vset.pattern.permute.xlu0 2
      %1120 = vperm.xlu0 %1119, %v790
      %v1121 = vpop.permute.xlu0 %1120
      %1123 = vset.pattern.permute.xlu0 2
      %1124 = vperm.xlu0 %1123, %v791
      %v1125 = vpop.permute.xlu0 %1124
      %1127 = vset.pattern.permute.xlu0 2
      %1128 = vperm.xlu0 %1127, %v792
      %v1129 = vpop.permute.xlu0 %1128
      %1131 = vset.pattern.permute.xlu0 2
      %1132 = vperm.xlu0 %1131, %v793
      %v1133 = vpop.permute.xlu0 %1132
      %1135 = vset.pattern.permute.xlu0 2
      %1136 = vperm.xlu0 %1135, %v794
      %v1137 = vpop.permute.xlu0 %1136
      %1139 = vset.pattern.permute.xlu0 2
      %1140 = vperm.xlu0 %1139, %v795
      %v1141 = vpop.permute.xlu0 %1140
      %1143 = vset.pattern.permute.xlu0 2
      %1144 = vperm.xlu0 %1143, %v796
      %v1145 = vpop.permute.xlu0 %1144
      %1147 = vset.pattern.permute.xlu0 2
      %1148 = vperm.xlu0 %1147, %v797
      %v1149 = vpop.permute.xlu0 %1148
      %1151 = vset.pattern.permute.xlu0 2
      %1152 = vperm.xlu0 %1151, %v798
      %v1153 = vpop.permute.xlu0 %1152
      %1155 = vset.pattern.permute.xlu0 2
      %1156 = vperm.xlu0 %1155, %v799
      %v1157 = vpop.permute.xlu0 %1156
      %1159 = vset.pattern.permute.xlu0 2
      %1160 = vperm.xlu0 %1159, %v800
      %v1161 = vpop.permute.xlu0 %1160
      %1163 = vset.pattern.permute.xlu0 2
      %1164 = vperm.xlu0 %1163, %v801
      %v1165 = vpop.permute.xlu0 %1164
      %1167 = vset.pattern.permute.xlu0 2
      %1168 = vperm.xlu0 %1167, %v802
      %v1169 = vpop.permute.xlu0 %1168
      %1171 = vset.pattern.permute.xlu0 2
      %1172 = vperm.xlu0 %1171, %v803
      %v1173 = vpop.permute.xlu0 %1172
      %v1175 = vperm.slane %v820, 2
      %v1176 = vsub.f32 %v1113, %v1175
      %v1177 = vsub.f32 %v1117, %v1175
      %v1178 = vsub.f32 %v1121, %v1175
      %v1179 = vsub.f32 %v1125, %v1175
      %v1180 = vsub.f32 %v1129, %v1175
      %v1181 = vsub.f32 %v1133, %v1175
      %v1182 = vsub.f32 %v1137, %v1175
      %v1183 = vsub.f32 %v1141, %v1175
      %v1184 = vsub.f32 %v1145, %v1175
      %v1185 = vsub.f32 %v1149, %v1175
      %v1186 = vsub.f32 %v1153, %v1175
      %v1187 = vsub.f32 %v1157, %v1175
      %v1188 = vsub.f32 %v1161, %v1175
      %v1189 = vsub.f32 %v1165, %v1175
      %v1190 = vsub.f32 %v1169, %v1175
      %v1191 = vsub.f32 %v1173, %v1175
      %v1192 = vand.u32 2147483647, %v1176
      %v1193 = vand.u32 2147483647, %v1177
      %v1194 = vand.u32 2147483647, %v1178
      %v1195 = vand.u32 2147483647, %v1179
      %v1196 = vand.u32 2147483647, %v1180
      %v1197 = vand.u32 2147483647, %v1181
      %v1198 = vand.u32 2147483647, %v1182
      %v1199 = vand.u32 2147483647, %v1183
      %v1200 = vand.u32 2147483647, %v1184
      %v1201 = vand.u32 2147483647, %v1185
      %v1202 = vand.u32 2147483647, %v1186
      %v1203 = vand.u32 2147483647, %v1187
      %v1204 = vand.u32 2147483647, %v1188
      %v1205 = vand.u32 2147483647, %v1189
      %v1206 = vand.u32 2147483647, %v1190
      %v1207 = vand.u32 2147483647, %v1191
      %v1208 = vadd.f32 %v1095, %v1192
      %v1209 = vadd.f32 %v1096, %v1193
      %v1210 = vadd.f32 %v1097, %v1194
      %v1211 = vadd.f32 %v1098, %v1195
      %v1212 = vadd.f32 %v1099, %v1196
      %v1213 = vadd.f32 %v1100, %v1197
      %v1214 = vadd.f32 %v1101, %v1198
      %v1215 = vadd.f32 %v1102, %v1199
      %v1216 = vadd.f32 %v1103, %v1200
      %v1217 = vadd.f32 %v1104, %v1201
      %v1218 = vadd.f32 %v1105, %v1202
      %v1219 = vadd.f32 %v1106, %v1203
      %v1220 = vadd.f32 %v1107, %v1204
      %v1221 = vadd.f32 %v1108, %v1205
      %v1222 = vadd.f32 %v1109, %v1206
      %v1223 = vadd.f32 %v1110, %v1207
      %1224 = vset.pattern.permute.xlu0 3
      %1225 = vperm.xlu0 %1224, %v788
      %v1226 = vpop.permute.xlu0 %1225
      %1228 = vset.pattern.permute.xlu0 3
      %1229 = vperm.xlu0 %1228, %v789
      %v1230 = vpop.permute.xlu0 %1229
      %1232 = vset.pattern.permute.xlu0 3
      %1233 = vperm.xlu0 %1232, %v790
      %v1234 = vpop.permute.xlu0 %1233
      %1236 = vset.pattern.permute.xlu0 3
      %1237 = vperm.xlu0 %1236, %v791
      %v1238 = vpop.permute.xlu0 %1237
      %1240 = vset.pattern.permute.xlu0 3
      %1241 = vperm.xlu0 %1240, %v792
      %v1242 = vpop.permute.xlu0 %1241
      %1244 = vset.pattern.permute.xlu0 3
      %1245 = vperm.xlu0 %1244, %v793
      %v1246 = vpop.permute.xlu0 %1245
      %1248 = vset.pattern.permute.xlu0 3
      %1249 = vperm.xlu0 %1248, %v794
      %v1250 = vpop.permute.xlu0 %1249
      %1252 = vset.pattern.permute.xlu0 3
      %1253 = vperm.xlu0 %1252, %v795
      %v1254 = vpop.permute.xlu0 %1253
      %1256 = vset.pattern.permute.xlu0 3
      %1257 = vperm.xlu0 %1256, %v796
      %v1258 = vpop.permute.xlu0 %1257
      %1260 = vset.pattern.permute.xlu0 3
      %1261 = vperm.xlu0 %1260, %v797
      %v1262 = vpop.permute.xlu0 %1261
      %1264 = vset.pattern.permute.xlu0 3
      %1265 = vperm.xlu0 %1264, %v798
      %v1266 = vpop.permute.xlu0 %1265
      %1268 = vset.pattern.permute.xlu0 3
      %1269 = vperm.xlu0 %1268, %v799
      %v1270 = vpop.permute.xlu0 %1269
      %1272 = vset.pattern.permute.xlu0 3
      %1273 = vperm.xlu0 %1272, %v800
      %v1274 = vpop.permute.xlu0 %1273
      %1276 = vset.pattern.permute.xlu0 3
      %1277 = vperm.xlu0 %1276, %v801
      %v1278 = vpop.permute.xlu0 %1277
      %1280 = vset.pattern.permute.xlu0 3
      %1281 = vperm.xlu0 %1280, %v802
      %v1282 = vpop.permute.xlu0 %1281
      %1284 = vset.pattern.permute.xlu0 3
      %1285 = vperm.xlu0 %1284, %v803
      %v1286 = vpop.permute.xlu0 %1285
      %v1288 = vperm.slane %v820, 3
      %v1289 = vsub.f32 %v1226, %v1288
      %v1290 = vsub.f32 %v1230, %v1288
      %v1291 = vsub.f32 %v1234, %v1288
      %v1292 = vsub.f32 %v1238, %v1288
      %v1293 = vsub.f32 %v1242, %v1288
      %v1294 = vsub.f32 %v1246, %v1288
      %v1295 = vsub.f32 %v1250, %v1288
      %v1296 = vsub.f32 %v1254, %v1288
      %v1297 = vsub.f32 %v1258, %v1288
      %v1298 = vsub.f32 %v1262, %v1288
      %v1299 = vsub.f32 %v1266, %v1288
      %v1300 = vsub.f32 %v1270, %v1288
      %v1301 = vsub.f32 %v1274, %v1288
      %v1302 = vsub.f32 %v1278, %v1288
      %v1303 = vsub.f32 %v1282, %v1288
      %v1304 = vsub.f32 %v1286, %v1288
      %v1305 = vand.u32 2147483647, %v1289
      %v1306 = vand.u32 2147483647, %v1290
      %v1307 = vand.u32 2147483647, %v1291
      %v1308 = vand.u32 2147483647, %v1292
      %v1309 = vand.u32 2147483647, %v1293
      %v1310 = vand.u32 2147483647, %v1294
      %v1311 = vand.u32 2147483647, %v1295
      %v1312 = vand.u32 2147483647, %v1296
      %v1313 = vand.u32 2147483647, %v1297
      %v1314 = vand.u32 2147483647, %v1298
      %v1315 = vand.u32 2147483647, %v1299
      %v1316 = vand.u32 2147483647, %v1300
      %v1317 = vand.u32 2147483647, %v1301
      %v1318 = vand.u32 2147483647, %v1302
      %v1319 = vand.u32 2147483647, %v1303
      %v1320 = vand.u32 2147483647, %v1304
      %v1321 = vadd.f32 %v1208, %v1305
      %v1322 = vadd.f32 %v1209, %v1306
      %v1323 = vadd.f32 %v1210, %v1307
      %v1324 = vadd.f32 %v1211, %v1308
      %v1325 = vadd.f32 %v1212, %v1309
      %v1326 = vadd.f32 %v1213, %v1310
      %v1327 = vadd.f32 %v1214, %v1311
      %v1328 = vadd.f32 %v1215, %v1312
      %v1329 = vadd.f32 %v1216, %v1313
      %v1330 = vadd.f32 %v1217, %v1314
      %v1331 = vadd.f32 %v1218, %v1315
      %v1332 = vadd.f32 %v1219, %v1316
      %v1333 = vadd.f32 %v1220, %v1317
      %v1334 = vadd.f32 %v1221, %v1318
      %v1335 = vadd.f32 %v1222, %v1319
      %v1336 = vadd.f32 %v1223, %v1320
      %1337 = vset.pattern.permute.xlu0 4
      %1338 = vperm.xlu0 %1337, %v788
      %v1339 = vpop.permute.xlu0 %1338
      %1341 = vset.pattern.permute.xlu0 4
      %1342 = vperm.xlu0 %1341, %v789
      %v1343 = vpop.permute.xlu0 %1342
      %1345 = vset.pattern.permute.xlu0 4
      %1346 = vperm.xlu0 %1345, %v790
      %v1347 = vpop.permute.xlu0 %1346
      %1349 = vset.pattern.permute.xlu0 4
      %1350 = vperm.xlu0 %1349, %v791
      %v1351 = vpop.permute.xlu0 %1350
      %1353 = vset.pattern.permute.xlu0 4
      %1354 = vperm.xlu0 %1353, %v792
      %v1355 = vpop.permute.xlu0 %1354
      %1357 = vset.pattern.permute.xlu0 4
      %1358 = vperm.xlu0 %1357, %v793
      %v1359 = vpop.permute.xlu0 %1358
      %1361 = vset.pattern.permute.xlu0 4
      %1362 = vperm.xlu0 %1361, %v794
      %v1363 = vpop.permute.xlu0 %1362
      %1365 = vset.pattern.permute.xlu0 4
      %1366 = vperm.xlu0 %1365, %v795
      %v1367 = vpop.permute.xlu0 %1366
      %1369 = vset.pattern.permute.xlu0 4
      %1370 = vperm.xlu0 %1369, %v796
      %v1371 = vpop.permute.xlu0 %1370
      %1373 = vset.pattern.permute.xlu0 4
      %1374 = vperm.xlu0 %1373, %v797
      %v1375 = vpop.permute.xlu0 %1374
      %1377 = vset.pattern.permute.xlu0 4
      %1378 = vperm.xlu0 %1377, %v798
      %v1379 = vpop.permute.xlu0 %1378
      %1381 = vset.pattern.permute.xlu0 4
      %1382 = vperm.xlu0 %1381, %v799
      %v1383 = vpop.permute.xlu0 %1382
      %1385 = vset.pattern.permute.xlu0 4
      %1386 = vperm.xlu0 %1385, %v800
      %v1387 = vpop.permute.xlu0 %1386
      %1389 = vset.pattern.permute.xlu0 4
      %1390 = vperm.xlu0 %1389, %v801
      %v1391 = vpop.permute.xlu0 %1390
      %1393 = vset.pattern.permute.xlu0 4
      %1394 = vperm.xlu0 %1393, %v802
      %v1395 = vpop.permute.xlu0 %1394
      %1397 = vset.pattern.permute.xlu0 4
      %1398 = vperm.xlu0 %1397, %v803
      %v1399 = vpop.permute.xlu0 %1398
      %v1401 = vperm.slane %v820, 4
      %v1402 = vsub.f32 %v1339, %v1401
      %v1403 = vsub.f32 %v1343, %v1401
      %v1404 = vsub.f32 %v1347, %v1401
      %v1405 = vsub.f32 %v1351, %v1401
      %v1406 = vsub.f32 %v1355, %v1401
      %v1407 = vsub.f32 %v1359, %v1401
      %v1408 = vsub.f32 %v1363, %v1401
      %v1409 = vsub.f32 %v1367, %v1401
      %v1410 = vsub.f32 %v1371, %v1401
      %v1411 = vsub.f32 %v1375, %v1401
      %v1412 = vsub.f32 %v1379, %v1401
      %v1413 = vsub.f32 %v1383, %v1401
      %v1414 = vsub.f32 %v1387, %v1401
      %v1415 = vsub.f32 %v1391, %v1401
      %v1416 = vsub.f32 %v1395, %v1401
      %v1417 = vsub.f32 %v1399, %v1401
      %v1418 = vand.u32 2147483647, %v1402
      %v1419 = vand.u32 2147483647, %v1403
      %v1420 = vand.u32 2147483647, %v1404
      %v1421 = vand.u32 2147483647, %v1405
      %v1422 = vand.u32 2147483647, %v1406
      %v1423 = vand.u32 2147483647, %v1407
      %v1424 = vand.u32 2147483647, %v1408
      %v1425 = vand.u32 2147483647, %v1409
      %v1426 = vand.u32 2147483647, %v1410
      %v1427 = vand.u32 2147483647, %v1411
      %v1428 = vand.u32 2147483647, %v1412
      %v1429 = vand.u32 2147483647, %v1413
      %v1430 = vand.u32 2147483647, %v1414
      %v1431 = vand.u32 2147483647, %v1415
      %v1432 = vand.u32 2147483647, %v1416
      %v1433 = vand.u32 2147483647, %v1417
      %v1434 = vadd.f32 %v1321, %v1418
      %v1435 = vadd.f32 %v1322, %v1419
      %v1436 = vadd.f32 %v1323, %v1420
      %v1437 = vadd.f32 %v1324, %v1421
      %v1438 = vadd.f32 %v1325, %v1422
      %v1439 = vadd.f32 %v1326, %v1423
      %v1440 = vadd.f32 %v1327, %v1424
      %v1441 = vadd.f32 %v1328, %v1425
      %v1442 = vadd.f32 %v1329, %v1426
      %v1443 = vadd.f32 %v1330, %v1427
      %v1444 = vadd.f32 %v1331, %v1428
      %v1445 = vadd.f32 %v1332, %v1429
      %v1446 = vadd.f32 %v1333, %v1430
      %v1447 = vadd.f32 %v1334, %v1431
      %v1448 = vadd.f32 %v1335, %v1432
      %v1449 = vadd.f32 %v1336, %v1433
      %1450 = vset.pattern.permute.xlu0 5
      %1451 = vperm.xlu0 %1450, %v788
      %v1452 = vpop.permute.xlu0 %1451
      %1454 = vset.pattern.permute.xlu0 5
      %1455 = vperm.xlu0 %1454, %v789
      %v1456 = vpop.permute.xlu0 %1455
      %1458 = vset.pattern.permute.xlu0 5
      %1459 = vperm.xlu0 %1458, %v790
      %v1460 = vpop.permute.xlu0 %1459
      %1462 = vset.pattern.permute.xlu0 5
      %1463 = vperm.xlu0 %1462, %v791
      %v1464 = vpop.permute.xlu0 %1463
      %1466 = vset.pattern.permute.xlu0 5
      %1467 = vperm.xlu0 %1466, %v792
      %v1468 = vpop.permute.xlu0 %1467
      %1470 = vset.pattern.permute.xlu0 5
      %1471 = vperm.xlu0 %1470, %v793
      %v1472 = vpop.permute.xlu0 %1471
      %1474 = vset.pattern.permute.xlu0 5
      %1475 = vperm.xlu0 %1474, %v794
      %v1476 = vpop.permute.xlu0 %1475
      %1478 = vset.pattern.permute.xlu0 5
      %1479 = vperm.xlu0 %1478, %v795
      %v1480 = vpop.permute.xlu0 %1479
      %1482 = vset.pattern.permute.xlu0 5
      %1483 = vperm.xlu0 %1482, %v796
      %v1484 = vpop.permute.xlu0 %1483
      %1486 = vset.pattern.permute.xlu0 5
      %1487 = vperm.xlu0 %1486, %v797
      %v1488 = vpop.permute.xlu0 %1487
      %1490 = vset.pattern.permute.xlu0 5
      %1491 = vperm.xlu0 %1490, %v798
      %v1492 = vpop.permute.xlu0 %1491
      %1494 = vset.pattern.permute.xlu0 5
      %1495 = vperm.xlu0 %1494, %v799
      %v1496 = vpop.permute.xlu0 %1495
      %1498 = vset.pattern.permute.xlu0 5
      %1499 = vperm.xlu0 %1498, %v800
      %v1500 = vpop.permute.xlu0 %1499
      %1502 = vset.pattern.permute.xlu0 5
      %1503 = vperm.xlu0 %1502, %v801
      %v1504 = vpop.permute.xlu0 %1503
      %1506 = vset.pattern.permute.xlu0 5
      %1507 = vperm.xlu0 %1506, %v802
      %v1508 = vpop.permute.xlu0 %1507
      %1510 = vset.pattern.permute.xlu0 5
      %1511 = vperm.xlu0 %1510, %v803
      %v1512 = vpop.permute.xlu0 %1511
      %v1514 = vperm.slane %v820, 5
      %v1515 = vsub.f32 %v1452, %v1514
      %v1516 = vsub.f32 %v1456, %v1514
      %v1517 = vsub.f32 %v1460, %v1514
      %v1518 = vsub.f32 %v1464, %v1514
      %v1519 = vsub.f32 %v1468, %v1514
      %v1520 = vsub.f32 %v1472, %v1514
      %v1521 = vsub.f32 %v1476, %v1514
      %v1522 = vsub.f32 %v1480, %v1514
      %v1523 = vsub.f32 %v1484, %v1514
      %v1524 = vsub.f32 %v1488, %v1514
      %v1525 = vsub.f32 %v1492, %v1514
      %v1526 = vsub.f32 %v1496, %v1514
      %v1527 = vsub.f32 %v1500, %v1514
      %v1528 = vsub.f32 %v1504, %v1514
      %v1529 = vsub.f32 %v1508, %v1514
      %v1530 = vsub.f32 %v1512, %v1514
      %v1531 = vand.u32 2147483647, %v1515
      %v1532 = vand.u32 2147483647, %v1516
      %v1533 = vand.u32 2147483647, %v1517
      %v1534 = vand.u32 2147483647, %v1518
      %v1535 = vand.u32 2147483647, %v1519
      %v1536 = vand.u32 2147483647, %v1520
      %v1537 = vand.u32 2147483647, %v1521
      %v1538 = vand.u32 2147483647, %v1522
      %v1539 = vand.u32 2147483647, %v1523
      %v1540 = vand.u32 2147483647, %v1524
      %v1541 = vand.u32 2147483647, %v1525
      %v1542 = vand.u32 2147483647, %v1526
      %v1543 = vand.u32 2147483647, %v1527
      %v1544 = vand.u32 2147483647, %v1528
      %v1545 = vand.u32 2147483647, %v1529
      %v1546 = vand.u32 2147483647, %v1530
      %v1547 = vadd.f32 %v1434, %v1531
      %v1548 = vadd.f32 %v1435, %v1532
      %v1549 = vadd.f32 %v1436, %v1533
      %v1550 = vadd.f32 %v1437, %v1534
      %v1551 = vadd.f32 %v1438, %v1535
      %v1552 = vadd.f32 %v1439, %v1536
      %v1553 = vadd.f32 %v1440, %v1537
      %v1554 = vadd.f32 %v1441, %v1538
      %v1555 = vadd.f32 %v1442, %v1539
      %v1556 = vadd.f32 %v1443, %v1540
      %v1557 = vadd.f32 %v1444, %v1541
      %v1558 = vadd.f32 %v1445, %v1542
      %v1559 = vadd.f32 %v1446, %v1543
      %v1560 = vadd.f32 %v1447, %v1544
      %v1561 = vadd.f32 %v1448, %v1545
      %v1562 = vadd.f32 %v1449, %v1546
      %1563 = vset.pattern.permute.xlu0 6
      %1564 = vperm.xlu0 %1563, %v788
      %v1565 = vpop.permute.xlu0 %1564
      %1567 = vset.pattern.permute.xlu0 6
      %1568 = vperm.xlu0 %1567, %v789
      %v1569 = vpop.permute.xlu0 %1568
      %1571 = vset.pattern.permute.xlu0 6
      %1572 = vperm.xlu0 %1571, %v790
      %v1573 = vpop.permute.xlu0 %1572
      %1575 = vset.pattern.permute.xlu0 6
      %1576 = vperm.xlu0 %1575, %v791
      %v1577 = vpop.permute.xlu0 %1576
      %1579 = vset.pattern.permute.xlu0 6
      %1580 = vperm.xlu0 %1579, %v792
      %v1581 = vpop.permute.xlu0 %1580
      %1583 = vset.pattern.permute.xlu0 6
      %1584 = vperm.xlu0 %1583, %v793
      %v1585 = vpop.permute.xlu0 %1584
      %1587 = vset.pattern.permute.xlu0 6
      %1588 = vperm.xlu0 %1587, %v794
      %v1589 = vpop.permute.xlu0 %1588
      %1591 = vset.pattern.permute.xlu0 6
      %1592 = vperm.xlu0 %1591, %v795
      %v1593 = vpop.permute.xlu0 %1592
      %1595 = vset.pattern.permute.xlu0 6
      %1596 = vperm.xlu0 %1595, %v796
      %v1597 = vpop.permute.xlu0 %1596
      %1599 = vset.pattern.permute.xlu0 6
      %1600 = vperm.xlu0 %1599, %v797
      %v1601 = vpop.permute.xlu0 %1600
      %1603 = vset.pattern.permute.xlu0 6
      %1604 = vperm.xlu0 %1603, %v798
      %v1605 = vpop.permute.xlu0 %1604
      %1607 = vset.pattern.permute.xlu0 6
      %1608 = vperm.xlu0 %1607, %v799
      %v1609 = vpop.permute.xlu0 %1608
      %1611 = vset.pattern.permute.xlu0 6
      %1612 = vperm.xlu0 %1611, %v800
      %v1613 = vpop.permute.xlu0 %1612
      %1615 = vset.pattern.permute.xlu0 6
      %1616 = vperm.xlu0 %1615, %v801
      %v1617 = vpop.permute.xlu0 %1616
      %1619 = vset.pattern.permute.xlu0 6
      %1620 = vperm.xlu0 %1619, %v802
      %v1621 = vpop.permute.xlu0 %1620
      %1623 = vset.pattern.permute.xlu0 6
      %1624 = vperm.xlu0 %1623, %v803
      %v1625 = vpop.permute.xlu0 %1624
      %v1627 = vperm.slane %v820, 6
      %v1628 = vsub.f32 %v1565, %v1627
      %v1629 = vsub.f32 %v1569, %v1627
      %v1630 = vsub.f32 %v1573, %v1627
      %v1631 = vsub.f32 %v1577, %v1627
      %v1632 = vsub.f32 %v1581, %v1627
      %v1633 = vsub.f32 %v1585, %v1627
      %v1634 = vsub.f32 %v1589, %v1627
      %v1635 = vsub.f32 %v1593, %v1627
      %v1636 = vsub.f32 %v1597, %v1627
      %v1637 = vsub.f32 %v1601, %v1627
      %v1638 = vsub.f32 %v1605, %v1627
      %v1639 = vsub.f32 %v1609, %v1627
      %v1640 = vsub.f32 %v1613, %v1627
      %v1641 = vsub.f32 %v1617, %v1627
      %v1642 = vsub.f32 %v1621, %v1627
      %v1643 = vsub.f32 %v1625, %v1627
      %v1644 = vand.u32 2147483647, %v1628
      %v1645 = vand.u32 2147483647, %v1629
      %v1646 = vand.u32 2147483647, %v1630
      %v1647 = vand.u32 2147483647, %v1631
      %v1648 = vand.u32 2147483647, %v1632
      %v1649 = vand.u32 2147483647, %v1633
      %v1650 = vand.u32 2147483647, %v1634
      %v1651 = vand.u32 2147483647, %v1635
      %v1652 = vand.u32 2147483647, %v1636
      %v1653 = vand.u32 2147483647, %v1637
      %v1654 = vand.u32 2147483647, %v1638
      %v1655 = vand.u32 2147483647, %v1639
      %v1656 = vand.u32 2147483647, %v1640
      %v1657 = vand.u32 2147483647, %v1641
      %v1658 = vand.u32 2147483647, %v1642
      %v1659 = vand.u32 2147483647, %v1643
      %v1660 = vadd.f32 %v1547, %v1644
      %v1661 = vadd.f32 %v1548, %v1645
      %v1662 = vadd.f32 %v1549, %v1646
      %v1663 = vadd.f32 %v1550, %v1647
      %v1664 = vadd.f32 %v1551, %v1648
      %v1665 = vadd.f32 %v1552, %v1649
      %v1666 = vadd.f32 %v1553, %v1650
      %v1667 = vadd.f32 %v1554, %v1651
      %v1668 = vadd.f32 %v1555, %v1652
      %v1669 = vadd.f32 %v1556, %v1653
      %v1670 = vadd.f32 %v1557, %v1654
      %v1671 = vadd.f32 %v1558, %v1655
      %v1672 = vadd.f32 %v1559, %v1656
      %v1673 = vadd.f32 %v1560, %v1657
      %v1674 = vadd.f32 %v1561, %v1658
      %v1675 = vadd.f32 %v1562, %v1659
      %1676 = vset.pattern.permute.xlu0 7
      %1677 = vperm.xlu0 %1676, %v788
      %v1678 = vpop.permute.xlu0 %1677
      %1680 = vset.pattern.permute.xlu0 7
      %1681 = vperm.xlu0 %1680, %v789
      %v1682 = vpop.permute.xlu0 %1681
      %1684 = vset.pattern.permute.xlu0 7
      %1685 = vperm.xlu0 %1684, %v790
      %v1686 = vpop.permute.xlu0 %1685
      %1688 = vset.pattern.permute.xlu0 7
      %1689 = vperm.xlu0 %1688, %v791
      %v1690 = vpop.permute.xlu0 %1689
      %1692 = vset.pattern.permute.xlu0 7
      %1693 = vperm.xlu0 %1692, %v792
      %v1694 = vpop.permute.xlu0 %1693
      %1696 = vset.pattern.permute.xlu0 7
      %1697 = vperm.xlu0 %1696, %v793
      %v1698 = vpop.permute.xlu0 %1697
      %1700 = vset.pattern.permute.xlu0 7
      %1701 = vperm.xlu0 %1700, %v794
      %v1702 = vpop.permute.xlu0 %1701
      %1704 = vset.pattern.permute.xlu0 7
      %1705 = vperm.xlu0 %1704, %v795
      %v1706 = vpop.permute.xlu0 %1705
      %1708 = vset.pattern.permute.xlu0 7
      %1709 = vperm.xlu0 %1708, %v796
      %v1710 = vpop.permute.xlu0 %1709
      %1712 = vset.pattern.permute.xlu0 7
      %1713 = vperm.xlu0 %1712, %v797
      %v1714 = vpop.permute.xlu0 %1713
      %1716 = vset.pattern.permute.xlu0 7
      %1717 = vperm.xlu0 %1716, %v798
      %v1718 = vpop.permute.xlu0 %1717
      %1720 = vset.pattern.permute.xlu0 7
      %1721 = vperm.xlu0 %1720, %v799
      %v1722 = vpop.permute.xlu0 %1721
      %1724 = vset.pattern.permute.xlu0 7
      %1725 = vperm.xlu0 %1724, %v800
      %v1726 = vpop.permute.xlu0 %1725
      %1728 = vset.pattern.permute.xlu0 7
      %1729 = vperm.xlu0 %1728, %v801
      %v1730 = vpop.permute.xlu0 %1729
      %1732 = vset.pattern.permute.xlu0 7
      %1733 = vperm.xlu0 %1732, %v802
      %v1734 = vpop.permute.xlu0 %1733
      %1736 = vset.pattern.permute.xlu0 7
      %1737 = vperm.xlu0 %1736, %v803
      %v1738 = vpop.permute.xlu0 %1737
      %v1740 = vperm.slane %v820, 7
      %v1741 = vsub.f32 %v1678, %v1740
      %v1742 = vsub.f32 %v1682, %v1740
      %v1743 = vsub.f32 %v1686, %v1740
      %v1744 = vsub.f32 %v1690, %v1740
      %v1745 = vsub.f32 %v1694, %v1740
      %v1746 = vsub.f32 %v1698, %v1740
      %v1747 = vsub.f32 %v1702, %v1740
      %v1748 = vsub.f32 %v1706, %v1740
      %v1749 = vsub.f32 %v1710, %v1740
      %v1750 = vsub.f32 %v1714, %v1740
      %v1751 = vsub.f32 %v1718, %v1740
      %v1752 = vsub.f32 %v1722, %v1740
      %v1753 = vsub.f32 %v1726, %v1740
      %v1754 = vsub.f32 %v1730, %v1740
      %v1755 = vsub.f32 %v1734, %v1740
      %v1756 = vsub.f32 %v1738, %v1740
      %v1757 = vand.u32 2147483647, %v1741
      %v1758 = vand.u32 2147483647, %v1742
      %v1759 = vand.u32 2147483647, %v1743
      %v1760 = vand.u32 2147483647, %v1744
      %v1761 = vand.u32 2147483647, %v1745
      %v1762 = vand.u32 2147483647, %v1746
      %v1763 = vand.u32 2147483647, %v1747
      %v1764 = vand.u32 2147483647, %v1748
      %v1765 = vand.u32 2147483647, %v1749
      %v1766 = vand.u32 2147483647, %v1750
      %v1767 = vand.u32 2147483647, %v1751
      %v1768 = vand.u32 2147483647, %v1752
      %v1769 = vand.u32 2147483647, %v1753
      %v1770 = vand.u32 2147483647, %v1754
      %v1771 = vand.u32 2147483647, %v1755
      %v1772 = vand.u32 2147483647, %v1756
      %v1773 = vadd.f32 %v1660, %v1757
      %v1774 = vadd.f32 %v1661, %v1758
      %v1775 = vadd.f32 %v1662, %v1759
      %v1776 = vadd.f32 %v1663, %v1760
      %v1777 = vadd.f32 %v1664, %v1761
      %v1778 = vadd.f32 %v1665, %v1762
      %v1779 = vadd.f32 %v1666, %v1763
      %v1780 = vadd.f32 %v1667, %v1764
      %v1781 = vadd.f32 %v1668, %v1765
      %v1782 = vadd.f32 %v1669, %v1766
      %v1783 = vadd.f32 %v1670, %v1767
      %v1784 = vadd.f32 %v1671, %v1768
      %v1785 = vadd.f32 %v1672, %v1769
      %v1786 = vadd.f32 %v1673, %v1770
      %v1787 = vadd.f32 %v1674, %v1771
      %v1788 = vadd.f32 %v1675, %v1772
      %v1789 = vunpack.c.l.bf16 %v276
      %v1790 = vunpack.c.l.bf16 %v277
      %v1791 = vunpack.c.l.bf16 %v278
      %v1792 = vunpack.c.l.bf16 %v279
      %v1793 = vunpack.c.l.bf16 %v280
      %v1794 = vunpack.c.l.bf16 %v281
      %v1795 = vunpack.c.l.bf16 %v282
      %v1796 = vunpack.c.l.bf16 %v283
      %v1797 = vunpack.c.l.bf16 %v284
      %v1798 = vunpack.c.l.bf16 %v285
      %v1799 = vunpack.c.l.bf16 %v286
      %v1800 = vunpack.c.l.bf16 %v287
      %v1801 = vunpack.c.l.bf16 %v288
      %v1802 = vunpack.c.l.bf16 %v289
      %v1803 = vunpack.c.l.bf16 %v290
      %v1804 = vunpack.c.l.bf16 %v291
      %v1805 = vadd.f32 %v1789, %v1790
      %v1806 = vadd.f32 %v1805, %v1791
      %v1807 = vadd.f32 %v1806, %v1792
      %v1808 = vadd.f32 %v1807, %v1793
      %v1809 = vadd.f32 %v1808, %v1794
      %v1810 = vadd.f32 %v1809, %v1795
      %v1811 = vadd.f32 %v1810, %v1796
      %v1812 = vadd.f32 %v1811, %v1797
      %v1813 = vadd.f32 %v1812, %v1798
      %v1814 = vadd.f32 %v1813, %v1799
      %v1815 = vadd.f32 %v1814, %v1800
      %v1816 = vadd.f32 %v1815, %v1801
      %v1817 = vadd.f32 %v1816, %v1802
      %v1818 = vadd.f32 %v1817, %v1803
      %v1819 = vadd.f32 %v1818, %v1804
      %1820 = vadd.xlane.f32.xlu0 %v1819
      %v1821 = vpop.xlane.xlu0 %1820
      %v1822 = vrot.slane %v1821, 4
      %v1823 = vadd.f32 %v1821, %v1822
      %v1824 = vrot.slane %v1823, 2
      %v1825 = vadd.f32 %v1823, %v1824
      %v1826 = vrot.slane %v1825, 1
      %v1827 = vadd.f32 %v1825, %v1826
      %s1828 = vtos %v1827
      %v1829 = vstv %s1828
      %v1830 = vmul.f32 %v1789, %v1773
      %v1831 = vmul.f32 %v1790, %v1774
      %v1832 = vmul.f32 %v1791, %v1775
      %v1833 = vmul.f32 %v1792, %v1776
      %v1834 = vmul.f32 %v1793, %v1777
      %v1835 = vmul.f32 %v1794, %v1778
      %v1836 = vmul.f32 %v1795, %v1779
      %v1837 = vmul.f32 %v1796, %v1780
      %v1838 = vmul.f32 %v1797, %v1781
      %v1839 = vmul.f32 %v1798, %v1782
      %v1840 = vmul.f32 %v1799, %v1783
      %v1841 = vmul.f32 %v1800, %v1784
      %v1842 = vmul.f32 %v1801, %v1785
      %v1843 = vmul.f32 %v1802, %v1786
      %v1844 = vmul.f32 %v1803, %v1787
      %v1845 = vmul.f32 %v1804, %v1788
      %v1846 = vadd.f32 %v1830, %v1831
      %v1847 = vadd.f32 %v1846, %v1832
      %v1848 = vadd.f32 %v1847, %v1833
      %v1849 = vadd.f32 %v1848, %v1834
      %v1850 = vadd.f32 %v1849, %v1835
      %v1851 = vadd.f32 %v1850, %v1836
      %v1852 = vadd.f32 %v1851, %v1837
      %v1853 = vadd.f32 %v1852, %v1838
      %v1854 = vadd.f32 %v1853, %v1839
      %v1855 = vadd.f32 %v1854, %v1840
      %v1856 = vadd.f32 %v1855, %v1841
      %v1857 = vadd.f32 %v1856, %v1842
      %v1858 = vadd.f32 %v1857, %v1843
      %v1859 = vadd.f32 %v1858, %v1844
      %v1860 = vadd.f32 %v1859, %v1845
      %1861 = vadd.xlane.f32.xlu0 %v1860
      %v1862 = vpop.xlane.xlu0 %1861
      %v1863 = vrot.slane %v1862, 4
      %v1864 = vadd.f32 %v1862, %v1863
      %v1865 = vrot.slane %v1864, 2
      %v1866 = vadd.f32 %v1864, %v1865
      %v1867 = vrot.slane %v1866, 1
      %v1868 = vadd.f32 %v1866, %v1867
      %s1869 = vtos %v1868
      %v1870 = vstv %s1869
      %v1871 = vmul.f32 %v1829, 2.0
      %v1872 = vadd.f32 %v1871, 1e-09
      %v1873 = vrcp.pop %v1872
      %v1874 = vmul.f32 %v1870, %v1873
      %1875 = vmatpush.bf16.msra.mxu0 %v843
      %1876 = vmatpush.bf16.msra.mxu0 %v842
      %1877 = vmatpush.bf16.msra.mxu0 %v841
      %1878 = vmatpush.bf16.msra.mxu0 %v840
      %1879 = vmatpush.bf16.msra.mxu0 %v839
      %1880 = vmatpush.bf16.msra.mxu0 %v838
      %1881 = vmatpush.bf16.msra.mxu0 %v837
      %1882 = vmatpush.bf16.msra.mxu0 %v836
      %1883 = vmatmul.bf16.gmra.mxu0 %v844
      %v1884 = vpop.f32.mrf.mxu0
      %v1885 = vadd.f32 0.0, %v1884
      %v1886 = vpop.f32.mrf.mxu0
      %1887 = vdwg.mxu0
      %v1888 = vlaneseq
      %v1889 = vand.u32 %v1888, 127
      %vm1890 = vcmp.eq.s32.totalorder %v208, %v1889
      %v1891 = vsel %vm1890, 1, 0
      %v1892 = vcvt.s32.f32 %v1891
      %v1893 = vmul.f32 %v1885, %v1885
      %v1894 = vsel %vm611, %v1893, 0.0
      %1895 = vadd.xlane.f32.xlu0 %v1894
      %v1896 = vpop.xlane.xlu0 %1895
      %v1897 = vrot.slane %v1896, 4
      %v1898 = vadd.f32 %v1896, %v1897
      %v1899 = vrot.slane %v1898, 2
      %v1900 = vadd.f32 %v1898, %v1899
      %v1901 = vrot.slane %v1900, 1
      %v1902 = vadd.f32 %v1900, %v1901
      %s1903 = vtos %v1902
      %v1904 = vstv %s1903
      %v1905 = vadd.f32 %v1904, 1e-12
      %v1906 = vrsqrt.pop %v1905
      %v1907 = vmul.f32 %v1906, %v1905
      %v1908 = vmul.f32 %v1907, %v1906
      %v1909 = vmul.f32 0.5, %v1908
      %v1910 = vsub.f32 1.5, %v1909
      %v1911 = vmul.f32 %v1906, %v1910
      %v1912 = vmul.f32 %v1905, %v1911
      %vm1913 = vcmp.eq.f32.partialorder %v1905, inf
      %v1914 = vsel %vm1913, %v1905, %v1912
      %vm1915 = vcmp.eq.f32.partialorder %v1905, 0.0
      %v1916 = vand.u32 %v1905, 2147483648
      %v1917 = vsel %vm1915, %v1916, %v1914
      %v1918 = vrcp.pop %v1917
      %v1919 = vmul.f32 %v1885, %v1918
      %v1920 = vmul.f32 %v1892, 0.35355338
      %v1921 = vsub.f32 %v1919, %v1920
      %v1922 = vmul.f32 %v1921, %v1921
      %v1923 = vsel %vm611, %v1922, 0.0
      %1924 = vadd.xlane.f32.xlu0 %v1923
      %v1925 = vpop.xlane.xlu0 %1924
      %v1926 = vrot.slane %v1925, 4
      %v1927 = vadd.f32 %v1925, %v1926
      %v1928 = vrot.slane %v1927, 2
      %v1929 = vadd.f32 %v1927, %v1928
      %v1930 = vrot.slane %v1929, 1
      %v1931 = vadd.f32 %v1929, %v1930
      %s1932 = vtos %v1931
      %v1933 = vstv %s1932
      %v1934 = vadd.f32 %v1933, 1e-12
      %v1935 = vrsqrt.pop %v1934
      %v1936 = vmul.f32 %v1935, %v1934
      %v1937 = vmul.f32 %v1936, %v1935
      %v1938 = vmul.f32 0.5, %v1937
      %v1939 = vsub.f32 1.5, %v1938
      %v1940 = vmul.f32 %v1935, %v1939
      %v1941 = vmul.f32 %v1934, %v1940
      %vm1942 = vcmp.eq.f32.partialorder %v1934, inf
      %v1943 = vsel %vm1942, %v1934, %v1941
      %vm1944 = vcmp.eq.f32.partialorder %v1934, 0.0
      %v1945 = vand.u32 %v1934, 2147483648
      %v1946 = vsel %vm1944, %v1945, %v1943
      %v1947 = vpack.c.bf16 %v855, %v855
      %v1949 = vsel %vm537, %v1947, 0
      %1951 = vmatpush.bf16.msra.mxu0 0
      %1952 = vmatpush.bf16.msra.mxu0 0
      %1953 = vmatpush.bf16.msra.mxu0 0
      %1954 = vmatpush.bf16.msra.mxu0 0
      %1955 = vmatpush.bf16.msra.mxu0 0
      %1956 = vmatpush.bf16.msra.mxu0 0
      %1957 = vmatpush.bf16.msra.mxu0 %v527
      %1958 = vmatpush.bf16.msra.mxu0 %v526
      %1959 = vmatmul.bf16.gmra.mxu0 %v1949
      %v1960 = vpop.f32.mrf.mxu0
      %v1961 = vadd.f32 0.0, %v1960
      %v1962 = vpop.f32.mrf.mxu0
      %1963 = vdwg.mxu0
      %v1964 = vpack.c.bf16 %v882, %v882
      %v1965 = vpack.c.bf16 %v1961, %v1961
      %v1967 = vsel %vm611, %v1964, 0
      %vm1969 = vcmask 1043456
      %v1971 = vsel %vm1969, %v1965, 0
      %1973 = vmatpush.bf16.msra.mxu0 0
      %1974 = vmatpush.bf16.msra.mxu0 0
      %1975 = vmatpush.bf16.msra.mxu0 0
      %1976 = vmatpush.bf16.msra.mxu0 0
      %1977 = vmatpush.bf16.msra.mxu0 0
      %1978 = vmatpush.bf16.msra.mxu0 0
      %1979 = vmatpush.bf16.msra.mxu0 0
      %1980 = vmatpush.bf16.msra.mxu0 %v1971
      %1981 = vmatmul.bf16.gmra.mxu0 %v1967
      %v1982 = vpop.f32.mrf.mxu0
      %v1983 = vadd.f32 %v1961, %v1982
      %v1984 = vpop.f32.mrf.mxu0
      %1985 = vdwg.mxu0
      %v1986 = vperm.slane %v202, 0
      %v1987 = vadd.f32 %v1983, %v1986
      %v1988 = vmax.f32 %v1987, 0.0
      %v1989 = vpack.c.bf16 %v1988, %v1988
      %v1990 = vperm.slane %v205, 0
      %1991 = vrot.lane.b32.xlu0 %v526, 56
      %v1992 = vpop.permute.xlu0 %1991
      %1993 = vrot.lane.b32.xlu0 %v527, 56
      %v1994 = vpop.permute.xlu0 %1993
      %v1998 = vsel %vm537, %v1989, 0
      %2000 = vmatpush.bf16.msra.mxu0 0
      %2001 = vmatpush.bf16.msra.mxu0 0
      %2002 = vmatpush.bf16.msra.mxu0 0
      %2003 = vmatpush.bf16.msra.mxu0 0
      %2004 = vmatpush.bf16.msra.mxu0 0
      %2005 = vmatpush.bf16.msra.mxu0 0
      %2006 = vmatpush.bf16.msra.mxu0 %v1994
      %2007 = vmatpush.bf16.msra.mxu0 %v1992
      %2008 = vmatmul.bf16.gmra.mxu0 %v1998
      %v2009 = vpop.f32.mrf.mxu0
      %v2010 = vadd.f32 %v1990, %v2009
      %v2011 = vpop.f32.mrf.mxu0
      %2012 = vdwg.mxu0
      %vm2013 = vcmask 31744
      %v2014 = vsel %vm2013, %v2010, -inf
      %2015 = vmax.xlane.f32.xlu0 %v2014
      %v2016 = vpop.xlane.xlu0 %2015
      %v2017 = vsub.f32 %v2010, %v2016
      %v2018 = vmul.f32 %v2017, 1.442695
      %v2019 = vpow.pop %v2018
      %v2020 = vsel %vm2013, %v2019, 0.0
      %2021 = vadd.xlane.f32.xlu0 %v2020
      %v2022 = vpop.xlane.xlu0 %2021
      %v2023 = vrcp.pop %v2022
      %v2024 = vmul.f32 %v2019, %v2023
      %2025 = vxpose.xlu0.b32.start [1/16] %v2024, 128
      %2026 = vxpose.xlu0.b32.cont [2/16] 0.0, 128
      %2027 = vxpose.xlu0.b32.cont [3/16] 0.0, 128
      %2028 = vxpose.xlu0.b32.cont [4/16] 0.0, 128
      %2029 = vxpose.xlu0.b32.cont [5/16] 0.0, 128
      %2030 = vxpose.xlu0.b32.cont [6/16] 0.0, 128
      %2031 = vxpose.xlu0.b32.cont [7/16] 0.0, 128
      %2032 = vxpose.xlu0.b32.cont [8/16] 0.0, 128
      %2033 = vxpose.xlu0.b32.cont [9/16] 0.0, 128
      %2034 = vxpose.xlu0.b32.cont [10/16] 0.0, 128
      %2035 = vxpose.xlu0.b32.cont [11/16] 0.0, 128
      %2036 = vxpose.xlu0.b32.cont [12/16] 0.0, 128
      %2037 = vxpose.xlu0.b32.cont [13/16] 0.0, 128
      %2038 = vxpose.xlu0.b32.cont [14/16] 0.0, 128
      %2039 = vxpose.xlu0.b32.cont [15/16] 0.0, 128
      %2040 = vxpose.xlu0.b32.end [16/16] 0.0, 128
      %v2041 = vpop.trf.xlu0
      %v2042 = vpop.trf.xlu0
      %v2043 = vpop.trf.xlu0
      %v2044 = vpop.trf.xlu0
      %v2045 = vpop.trf.xlu0
      %v2046 = vpop.trf.xlu0
      %v2047 = vpop.trf.xlu0
      %v2048 = vpop.trf.xlu0
      %v2049 = vpop.trf.xlu0
      %v2050 = vpop.trf.xlu0
      %v2051 = vpop.trf.xlu0
      %v2052 = vpop.trf.xlu0
      %v2053 = vpop.trf.xlu0
      %v2054 = vpop.trf.xlu0
      %v2055 = vpop.trf.xlu0
      %v2056 = vpop.trf.xlu0
      %v2057 = vpack.c.bf16 %v2024, %v2024
      %v2058 = vpack.c.bf16 %v2041, %v2041
      %v2060 = vsel %vm611, %v2058, 0
      %v2062 = vsel %vm1969, %v1989, 0
      %2064 = vmatpush.bf16.msra.mxu0 0
      %2065 = vmatpush.bf16.msra.mxu0 0
      %2066 = vmatpush.bf16.msra.mxu0 0
      %2067 = vmatpush.bf16.msra.mxu0 0
      %2068 = vmatpush.bf16.msra.mxu0 0
      %2069 = vmatpush.bf16.msra.mxu0 0
      %2070 = vmatpush.bf16.msra.mxu0 0
      %2071 = vmatpush.bf16.msra.mxu0 %v2062
      %2072 = vmatmul.bf16.gmra.mxu0 %v2060
      %v2073 = vpop.f32.mrf.mxu0
      %v2074 = vadd.f32 0.0, %v2073
      %v2075 = vpop.f32.mrf.mxu0
      %2076 = vdwg.mxu0
      %v2077 = vsel %vm1969, %v1964, 0
      %2079 = vmatpush.bf16.msra.mxu0 0
      %2080 = vmatpush.bf16.msra.mxu0 0
      %2081 = vmatpush.bf16.msra.mxu0 0
      %2082 = vmatpush.bf16.msra.mxu0 0
      %2083 = vmatpush.bf16.msra.mxu0 0
      %2084 = vmatpush.bf16.msra.mxu0 0
      %2085 = vmatpush.bf16.msra.mxu0 0
      %2086 = vmatpush.bf16.msra.mxu0 %v2077
      %2087 = vmatmul.bf16.gmra.mxu0 %v2060
      %v2088 = vpop.f32.mrf.mxu0
      %v2089 = vadd.f32 0.0, %v2088
      %v2090 = vpop.f32.mrf.mxu0
      %2091 = vdwg.mxu0
      %v2092 = vpack.c.bf16 %v2089, %v2089
      %v2094 = vsel %vm611, %v2092, 0
      %v2097 = vsel %vm1969, %v2057, 0
      %2099 = vmatpush.bf16.msra.mxu0 0
      %2100 = vmatpush.bf16.msra.mxu0 0
      %2101 = vmatpush.bf16.msra.mxu0 0
      %2102 = vmatpush.bf16.msra.mxu0 0
      %2103 = vmatpush.bf16.msra.mxu0 0
      %2104 = vmatpush.bf16.msra.mxu0 0
      %2105 = vmatpush.bf16.msra.mxu0 0
      %2106 = vmatpush.bf16.msra.mxu0 %v2097
      %2107 = vmatmul.bf16.gmra.mxu0 %v2094
      %v2108 = vpop.f32.mrf.mxu0
      %v2109 = vadd.f32 0.0, %v2108
      %v2110 = vpop.f32.mrf.mxu0
      %2111 = vdwg.mxu0
      %2113 = vset.pattern.permute.xlu0 0
      %2114 = vperm.xlu0 %2113, %v2024
      %v2115 = vpop.permute.xlu0 %2114
      %v2117 = vperm.slane %v2041, 0
      %v2118 = vsub.f32 %v2115, %v2117
      %v2119 = vand.u32 2147483647, %v2118
      %2120 = vset.pattern.permute.xlu0 1
      %2121 = vperm.xlu0 %2120, %v2024
      %v2122 = vpop.permute.xlu0 %2121
      %v2124 = vperm.slane %v2041, 1
      %v2125 = vsub.f32 %v2122, %v2124
      %v2126 = vand.u32 2147483647, %v2125
      %v2127 = vadd.f32 %v2119, %v2126
      %2128 = vset.pattern.permute.xlu0 2
      %2129 = vperm.xlu0 %2128, %v2024
      %v2130 = vpop.permute.xlu0 %2129
      %v2132 = vperm.slane %v2041, 2
      %v2133 = vsub.f32 %v2130, %v2132
      %v2134 = vand.u32 2147483647, %v2133
      %v2135 = vadd.f32 %v2127, %v2134
      %2136 = vset.pattern.permute.xlu0 3
      %2137 = vperm.xlu0 %2136, %v2024
      %v2138 = vpop.permute.xlu0 %2137
      %v2140 = vperm.slane %v2041, 3
      %v2141 = vsub.f32 %v2138, %v2140
      %v2142 = vand.u32 2147483647, %v2141
      %v2143 = vadd.f32 %v2135, %v2142
      %v2144 = vsel %vm611, %v882, 0.0
      %2145 = vadd.xlane.f32.xlu0 %v2144
      %v2146 = vpop.xlane.xlu0 %2145
      %v2147 = vrot.slane %v2146, 4
      %v2148 = vadd.f32 %v2146, %v2147
      %v2149 = vrot.slane %v2148, 2
      %v2150 = vadd.f32 %v2148, %v2149
      %v2151 = vrot.slane %v2150, 1
      %v2152 = vadd.f32 %v2150, %v2151
      %s2153 = vtos %v2152
      %v2154 = vstv %s2153
      %v2155 = vmul.f32 %v882, %v2143
      %v2156 = vsel %vm611, %v2155, 0.0
      %2157 = vadd.xlane.f32.xlu0 %v2156
      %v2158 = vpop.xlane.xlu0 %2157
      %v2159 = vrot.slane %v2158, 4
      %v2160 = vadd.f32 %v2158, %v2159
      %v2161 = vrot.slane %v2160, 2
      %v2162 = vadd.f32 %v2160, %v2161
      %v2163 = vrot.slane %v2162, 1
      %v2164 = vadd.f32 %v2162, %v2163
      %s2165 = vtos %v2164
      %v2166 = vstv %s2165
      %v2167 = vmul.f32 %v2154, 2.0
      %v2168 = vadd.f32 %v2167, 1e-09
      %v2169 = vrcp.pop %v2168
      %v2170 = vmul.f32 %v2166, %v2169
      %2171 = vmatpush.bf16.msra.mxu0 0
      %2172 = vmatpush.bf16.msra.mxu0 0
      %2173 = vmatpush.bf16.msra.mxu0 0
      %2174 = vmatpush.bf16.msra.mxu0 0
      %2175 = vmatpush.bf16.msra.mxu0 0
      %2176 = vmatpush.bf16.msra.mxu0 0
      %2177 = vmatpush.bf16.msra.mxu0 0
      %2178 = vmatpush.bf16.msra.mxu0 %v2097
      %2179 = vmatmul.bf16.gmra.mxu0 %v2060
      %v2180 = vpop.f32.mrf.mxu0
      %v2181 = vadd.f32 0.0, %v2180
      %v2182 = vpop.f32.mrf.mxu0
      %2183 = vdwg.mxu0
      %v2184 = vmul.f32 %v2181, %v2181
      %vm2185 = vcmask 27648
      %v2186 = vsel %vm2185, %v2184, 0.0
      %2187 = vadd.xlane.f32.xlu0 %v2186
      %v2188 = vpop.xlane.xlu0 %2187
      %v2189 = vrot.slane %v2188, 4
      %v2190 = vadd.f32 %v2188, %v2189
      %v2191 = vrot.slane %v2190, 2
      %v2192 = vadd.f32 %v2190, %v2191
      %v2193 = vrot.slane %v2192, 1
      %v2194 = vadd.f32 %v2192, %v2193
      %s2195 = vtos %v2194
      %v2196 = vstv %s2195
      %v2197 = vadd.f32 %v2196, 1e-12
      %v2198 = vrsqrt.pop %v2197
      %v2199 = vmul.f32 %v2198, %v2197
      %v2200 = vmul.f32 %v2199, %v2198
      %v2201 = vmul.f32 0.5, %v2200
      %v2202 = vsub.f32 1.5, %v2201
      %v2203 = vmul.f32 %v2198, %v2202
      %v2204 = vmul.f32 %v2197, %v2203
      %vm2205 = vcmp.eq.f32.partialorder %v2197, inf
      %v2206 = vsel %vm2205, %v2197, %v2204
      %vm2207 = vcmp.eq.f32.partialorder %v2197, 0.0
      %v2208 = vand.u32 %v2197, 2147483648
      %v2209 = vsel %vm2207, %v2208, %v2206
      %v2210 = vrcp.pop %v2209
      %v2211 = vmul.f32 %v2181, %v2210
      %v2212 = vmul.f32 %v1892, 0.5
      %v2213 = vsub.f32 %v2211, %v2212
      %v2214 = vmul.f32 %v2213, %v2213
      %v2215 = vsel %vm2185, %v2214, 0.0
      %2216 = vadd.xlane.f32.xlu0 %v2215
      %v2217 = vpop.xlane.xlu0 %2216
      %v2218 = vrot.slane %v2217, 4
      %v2219 = vadd.f32 %v2217, %v2218
      %v2220 = vrot.slane %v2219, 2
      %v2221 = vadd.f32 %v2219, %v2220
      %v2222 = vrot.slane %v2221, 1
      %v2223 = vadd.f32 %v2221, %v2222
      %s2224 = vtos %v2223
      %v2225 = vstv %s2224
      %v2226 = vadd.f32 %v2225, 1e-12
      %v2227 = vrsqrt.pop %v2226
      %v2228 = vmul.f32 %v2227, %v2226
      %v2229 = vmul.f32 %v2228, %v2227
      %v2230 = vmul.f32 0.5, %v2229
      %v2231 = vsub.f32 1.5, %v2230
      %v2232 = vmul.f32 %v2227, %v2231
      %v2233 = vmul.f32 %v2226, %v2232
      %vm2234 = vcmp.eq.f32.partialorder %v2226, inf
      %v2235 = vsel %vm2234, %v2226, %v2233
      %vm2236 = vcmp.eq.f32.partialorder %v2226, 0.0
      %v2237 = vand.u32 %v2226, 2147483648
      %v2238 = vsel %vm2236, %v2237, %v2235
      %v2239 = vpack.c.bf16 %v2074, %v2074
      %2240 = vrot.lane.b32.xlu0 %v526, 96
      %v2241 = vpop.permute.xlu0 %2240
      %2242 = vrot.lane.b32.xlu0 %v527, 96
      %v2243 = vpop.permute.xlu0 %2242
      %v2247 = vsel %vm537, %v2239, 0
      %2249 = vmatpush.bf16.msra.mxu0 0
      %2250 = vmatpush.bf16.msra.mxu0 0
      %2251 = vmatpush.bf16.msra.mxu0 0
      %2252 = vmatpush.bf16.msra.mxu0 0
      %2253 = vmatpush.bf16.msra.mxu0 0
      %2254 = vmatpush.bf16.msra.mxu0 0
      %2255 = vmatpush.bf16.msra.mxu0 %v2243
      %2256 = vmatpush.bf16.msra.mxu0 %v2241
      %2257 = vmatmul.bf16.gmra.mxu0 %v2247
      %v2258 = vpop.f32.mrf.mxu0
      %v2259 = vadd.f32 0.0, %v2258
      %v2260 = vpop.f32.mrf.mxu0
      %2261 = vdwg.mxu0
      %v2262 = vpack.c.bf16 %v2109, %v2109
      %v2263 = vpack.c.bf16 %v2259, %v2259
      %v2265 = vsel %vm2013, %v2262, 0
      %vm2267 = vcmask 1041408
      %v2269 = vsel %vm2267, %v2263, 0
      %2271 = vmatpush.bf16.msra.mxu0 0
      %2272 = vmatpush.bf16.msra.mxu0 0
      %2273 = vmatpush.bf16.msra.mxu0 0
      %2274 = vmatpush.bf16.msra.mxu0 0
      %2275 = vmatpush.bf16.msra.mxu0 0
      %2276 = vmatpush.bf16.msra.mxu0 0
      %2277 = vmatpush.bf16.msra.mxu0 0
      %2278 = vmatpush.bf16.msra.mxu0 %v2269
      %2279 = vmatmul.bf16.gmra.mxu0 %v2265
      %v2280 = vpop.f32.mrf.mxu0
      %v2281 = vadd.f32 %v2259, %v2280
      %v2282 = vpop.f32.mrf.mxu0
      %2283 = vdwg.mxu0
      %v2284 = vperm.slane %v203, 0
      %v2285 = vadd.f32 %v2281, %v2284
      %v2286 = vmax.f32 %v2285, 0.0
      %vm2287 = vcmask 257024
      %v2288 = vsel %vm2287, %v2286, 0.0
      %v2289 = vrot.slane %v2288, 4
      %v2290 = vadd.f32 %v2288, %v2289
      %v2291 = vrot.slane %v2290, 2
      %v2292 = vadd.f32 %v2290, %v2291
      %v2293 = vrot.slane %v2292, 1
      %v2294 = vadd.f32 %v2292, %v2293
      %v2295 = vrcp.pop 4.0
      %v2296 = vmul.f32 4.0, %v2295
      %v2297 = vsub.f32 1.0, %v2296
      %v2298 = vmul.f32 %v2295, %v2297
      %v2299 = vadd.f32 %v2295, %v2298
      %vm2300 = vweird.f32 %v2295
      %v2301 = vsel %vm2300, %v2295, %v2299
      %v2302 = vmul.f32 %v2294, %v2301
      %2307 = vrot.lane.b32.xlu0 %v197, 52
      %v2308 = vpop.permute.xlu0 %2307
      %2309 = vrot.lane.b32.xlu0 %v198, 52
      %v2310 = vpop.permute.xlu0 %2309
      %2311 = vrot.lane.b32.xlu0 %v199, 52
      %v2312 = vpop.permute.xlu0 %2311
      %2313 = vrot.lane.b32.xlu0 %v200, 52
      %v2314 = vpop.permute.xlu0 %2313
      %v2320 = vsel %vm537, %v2302, 0
      %2322 = vmatpush.msra.mxu0 0.0
      %2323 = vmatpush.msra.mxu0 0.0
      %2324 = vmatpush.msra.mxu0 0.0
      %2325 = vmatpush.msra.mxu0 0.0
      %2326 = vmatpush.msra.mxu0 0.0
      %2327 = vmatpush.msra.mxu0 0.0
      %2328 = vmatpush.msra.mxu0 0.0
      %2329 = vmatpush.msra.mxu0 0.0
      %2330 = vmatpush.msra.mxu0 0.0
      %2331 = vmatpush.msra.mxu0 0.0
      %2332 = vmatpush.msra.mxu0 0.0
      %2333 = vmatpush.msra.mxu0 0.0
      %2334 = vmatpush.msra.mxu0 %v2314
      %2335 = vmatpush.msra.mxu0 %v2312
      %2336 = vmatpush.msra.mxu0 %v2310
      %2337 = vmatpush.msra.mxu0 %v2308
      %2338 = vmatmul.f32.gmra.mxu0 %v2320
      %v2339 = vpop.f32.mrf.mxu0
      %v2340 = vadd.f32 %v206, %v2339
      %2341 = vdwg.mxu0
      %vm2342 = vcmask 8192
      %2343 = vst.msk [vmem:[%s195] sm:$0x1] %vm2342, %v2340
      %v2344 = vadd.f32 %v1874, %v2170
      %vm2345 = vcmask 16400
      %2346 = vst.msk [vmem:[%s195] sm:$0x1] %vm2345, %v2344
      %v2347 = vadd.f32 %v1946, %v2238
      %vm2348 = vcmask 24600
      %2349 = vst.msk [vmem:[%s195] sm:$0x1] %vm2348, %v2347
      %p2350 = scmp.lt.s32.totalorder %s23, 1
      %s2351 = scalar_select %p2350, %s23, 1
      %s2352 = scalar_lea.vmem %s4, %s2351
      // Predicated region
      $region33: #{classification_forward.1} parent=31 // pred_check
        %p2353 = pneg %p114
      $region34: #{classification_forward.1} parent=31 // pred_check_branch
        %2355 = sbr.rel (%p2353) target = $region36
      $region35: #{classification_forward.1} parent=31 // pred_region
        _
      $region36: #{classification_forward.1} parent=31 // pred_fallthru
        _
    $region32: #{classification_forward.1} parent=5 // pred_fallthru
      _
    %p2356 = scmp.le.s32.totalorder 2, %s18
    // Predicated region
    $region37: #{classification_forward.1} parent=5 // pred_check
      %p2357 = pneg %p2356
    $region38: #{classification_forward.1} parent=5 // pred_check_branch
      %2359 = sbr.rel (%p2357) target = $region40
    $region39: #{classification_forward.1} parent=5 // pred_region
      %s2360 = ssub.s32 %s18, 2
      // Predicated region
      $region41: #{classification_forward.1} parent=39 // pred_check
        %p2361 = pneg %p120
      $region42: #{classification_forward.1} parent=39 // pred_check_branch
        %2363 = sbr.rel (%p2361) target = $region44
      $region43: #{classification_forward.1} parent=39 // pred_region
        %p2364 = scmp.lt.s32.totalorder %s24, 1
        %s2365 = scalar_select %p2364, %s24, 1
        %s2366 = scalar_lea.vmem %s4, %s2365
      $region44: #{classification_forward.1} parent=39 // pred_fallthru
        _
    $region40: #{classification_forward.1} parent=5 // pred_fallthru
      _
  $region6: #{classification_forward.1} parent=0 // loop_footer
    %s22 = sadd.s32 1, %s18
  $region7: #{classification_forward.1} parent=0 // loop_footer_branch
    %17 = sbr.rel target = $region3
  $region8: #{classification_forward.1} parent=0 // loop_exit
    _

</llo_original>
